<compile_context>
chip_gen: v6e
topology: v6e:2x2x1
jax: 0.10.0
libtpu: 0.0.40
codegen_flags: <defaults>
</compile_context>

<pallas_src>
import jax
import jax.numpy as jnp
from jax.experimental import pallas as pl
from jax.experimental.pallas import tpu as pltpu

EPS = 1e-5
_LANE = 128


def _round_up(x, m):
    return (x + m - 1) // m * m


def _conv_stats_kernel(xk_ref, w_ref, y_ref, s1_ref, s2_ref):
    # xk_ref: (TR, W+2, 3*Cin) bf16  -- kh taps stacked on the channel axis
    # w_ref:  (3, 3*Cin, Coutp) bf16 -- one (3*Cin, Coutp) matrix per kw tap
    # y_ref:  (TR*W, Coutp) f32      -- conv output rows for this tile
    # s1/s2:  (1, 1, Coutp) f32      -- per-tile sum / sum-of-squares (BN stats)
    tr, wpad, k3 = xk_ref.shape
    w_out = wpad - 2
    coutp = y_ref.shape[-1]

    acc = jnp.zeros((tr * w_out, coutp), jnp.float32)
    for dw in range(3):  # unrolled at trace time; kw taps = static slices, no HBM dup
        patch = xk_ref[:, dw:dw + w_out, :].reshape(tr * w_out, k3)
        acc = acc + jnp.dot(patch, w_ref[dw], preferred_element_type=jnp.float32)

    y_ref[...] = acc
    s1 = jnp.sum(acc, axis=0, keepdims=True)         # (1, Coutp)
    s2 = jnp.sum(acc * acc, axis=0, keepdims=True)   # (1, Coutp)
    s1_ref[...] = s1[None, :, :]
    s2_ref[...] = s2[None, :, :]


def _bn_silu_kernel(y_ref, scale_ref, shift_ref, o_ref):
    # BN folded to a per-channel affine: z = y * scale + shift, then SiLU.
    z = y_ref[...] * scale_ref[...] + shift_ref[...]
    o_ref[...] = z * jax.nn.sigmoid(z)


def conv_block_forward(x_nchw, weight_oihw, gamma, beta):
    """x_nchw: (N, Cin, H, W); weight_oihw: (Cout, Cin, 3, 3); gamma/beta: (Cout,)."""
    n, cin, h, w = x_nchw.shape
    cout, cin_w, kh, kw = weight_oihw.shape
    assert (kh, kw) == (3, 3) and cin_w == cin

    coutp = _round_up(cout, _LANE)      # lane-dense output channels
    k3 = 3 * cin
    nh = n * h
    r_true = n * h * w

    # ---- glue (XLA): NCHW -> NHWC bf16, W padding, kh taps stacked on channels.
    x_nhwc = jnp.transpose(x_nchw, (0, 2, 3, 1)).astype(jnp.bfloat16)
    xw = jnp.pad(x_nhwc, ((0, 0), (0, 0), (1, 1), (0, 0)))           # (N, H, W+2, Cin)
    s_up = jnp.pad(xw, ((0, 0), (1, 0), (0, 0), (0, 0)))[:, :h]      # input row h-1 (kh=0)
    s_dn = jnp.pad(xw, ((0, 0), (0, 1), (0, 0), (0, 0)))[:, 1:]      # input row h+1 (kh=2)
    xk = jnp.concatenate([s_up, xw, s_dn], axis=-1)                  # (N, H, W+2, 3*Cin)
    xk = xk.reshape(nh, w + 2, k3)

    # ---- row tiling over N*H, sized from a small VMEM budget (ports v5e/v6e/v7x).
    bytes_per_row = w * coutp * 4 * 2 + (w + 2) * k3 * 2 * 2         # y dbl-buf + xk dbl-buf
    tr = max(8, (6 * 1024 * 1024) // max(bytes_per_row, 1))
    tr = min(tr, _round_up(nh, 8))
    tr = max(8, (tr // 8) * 8)                                       # keep TR*W % 8 == 0
    rp = _round_up(nh, tr)
    num_tiles = rp // tr
    if rp > nh:
        xk = jnp.pad(xk, ((0, rp - nh), (0, 0), (0, 0)))             # zero rows -> y == 0 there

    # ---- weight: (Cout, Cin, 3, 3) -> (kw, kh*Cin, Coutp), bf16, lane-padded.
    wt = jnp.transpose(weight_oihw, (3, 2, 1, 0)).reshape(3, k3, cout)
    wt = jnp.pad(wt, ((0, 0), (0, 0), (0, coutp - cout))).astype(jnp.bfloat16)

    # ---- pass 1: conv (bf16 MXU, f32 accumulation) + per-tile BN partial sums.
    xk_blk = tr * (w + 2) * k3 * 2
    y_blk = tr * w * coutp * 4
    w_bytes = 3 * k3 * coutp * 2
    vmem1 = int(min(64 << 20, max(16 << 20, 2 * (xk_blk + y_blk) + w_bytes + (4 << 20))))
    cost1 = pl.CostEstimate(
        flops=int(2 * rp * w * (9 * cin) * coutp),
        transcendentals=0,
        bytes_accessed=int(rp * (w + 2) * k3 * 2 + w_bytes + rp * w * coutp * 4),
    )

    y, ps1, ps2 = pl.pallas_call(
        _conv_stats_kernel,
        out_shape=(
            jax.ShapeDtypeStruct((rp * w, coutp), jnp.float32),
            jax.ShapeDtypeStruct((num_tiles, 1, coutp), jnp.float32),
            jax.ShapeDtypeStruct((num_tiles, 1, coutp), jnp.float32),
        ),
        grid=(num_tiles,),
        in_specs=[
            pl.BlockSpec((tr, w + 2, k3), lambda i: (i, 0, 0)),
            pl.BlockSpec((3, k3, coutp), lambda i: (0, 0, 0)),
        ],
        out_specs=(
            pl.BlockSpec((tr * w, coutp), lambda i: (i, 0)),
            pl.BlockSpec((1, 1, coutp), lambda i: (i, 0, 0)),
            pl.BlockSpec((1, 1, coutp), lambda i: (i, 0, 0)),
        ),
        compiler_params=pltpu.CompilerParams(
            dimension_semantics=("parallel",),
            vmem_limit_bytes=vmem1,
        ),
        cost_estimate=cost1,
    )(xk, wt)

    # ---- BN batch statistics folded to a per-channel affine (tiny XLA ops).
    # Padded rows / padded channels contribute exactly zero, so divide by the true count.
    s1 = jnp.sum(ps1, axis=0).reshape(coutp)
    s2 = jnp.sum(ps2, axis=0).reshape(coutp)
    mean = s1 / r_true
    var = jnp.maximum(s2 / r_true - mean * mean, 0.0)
    gamma_p = jnp.pad(gamma.astype(jnp.float32), (0, coutp - cout))
    beta_p = jnp.pad(beta.astype(jnp.float32), (0, coutp - cout))
    scale = gamma_p * jax.lax.rsqrt(var + EPS)
    shift = beta_p - mean * scale
    scale2 = scale.reshape(1, coutp)
    shift2 = shift.reshape(1, coutp)
    # TODO(synk): nn.BatchNorm2d's running_mean/var (momentum) update is not reproduced;
    # this implements the training-mode normalization of the forward pass only.

    # ---- pass 2: fused affine-BN + SiLU over lane-dense row tiles.
    tb = tr * w
    vmem2 = int(min(64 << 20, max(16 << 20, 4 * tb * coutp * 4 + (4 << 20))))
    cost2 = pl.CostEstimate(
        flops=int(4 * rp * w * coutp),
        transcendentals=int(rp * w * coutp),
        bytes_accessed=int(2 * rp * w * coutp * 4),
    )
    out_flat = pl.pallas_call(
        _bn_silu_kernel,
        out_shape=jax.ShapeDtypeStruct((rp * w, coutp), jnp.float32),
        grid=(num_tiles,),
        in_specs=[
            pl.BlockSpec((tb, coutp), lambda i: (i, 0)),
            pl.BlockSpec((1, coutp), lambda i: (0, 0)),
            pl.BlockSpec((1, coutp), lambda i: (0, 0)),
        ],
        out_specs=pl.BlockSpec((tb, coutp), lambda i: (i, 0)),
        compiler_params=pltpu.CompilerParams(
            dimension_semantics=("parallel",),
            vmem_limit_bytes=vmem2,
        ),
        cost_estimate=cost2,
    )(y, scale2, shift2)

    # ---- glue: strip row/channel padding, back to NCHW f32.
    out_nhwc = out_flat[:r_true, :cout].reshape(n, h, w, cout)
    return jnp.transpose(out_nhwc, (0, 3, 1, 2))


if __name__ == "__main__":
    key = jax.random.PRNGKey(0)
    k_x, k_w = jax.random.split(key)

    N, CIN, COUT, H, W = 2, 4, 8, 16, 16

    x = jax.random.normal(k_x, (N, CIN, H, W), dtype=jnp.float32)
    # deterministic Conv2d weight init (kaiming-uniform-like bound), gamma=1, beta=0
    fan_in = CIN * 3 * 3
    bound = 1.0 / (fan_in ** 0.5)
    weight = jax.random.uniform(
        k_w, (COUT, CIN, 3, 3), minval=-bound, maxval=bound, dtype=jnp.float32
    )
    gamma = jnp.ones((COUT,), dtype=jnp.float32)
    beta = jnp.zeros((COUT,), dtype=jnp.float32)

    out = conv_block_forward(x, weight, gamma, beta)
    jax.block_until_ready(out)
    assert out.shape == (N, COUT, H, W)
    assert bool(jnp.all(jnp.isfinite(out)))
    print("KERNEL_OK")
</pallas_src>

<mosaic_0001>
module attributes {stable_mosaic.version = 11 : i64} {
  func.func @_conv_stats_kernel(%arg0: i32, %arg1: memref<32x18x12xbf16, #tpu.memory_space<vmem>>, %arg2: memref<3x12x128xbf16, #tpu.memory_space<vmem>>, %arg3: memref<512x128xf32, #tpu.memory_space<vmem>>, %arg4: memref<1x1x128xf32, #tpu.memory_space<vmem>>, %arg5: memref<1x1x128xf32, #tpu.memory_space<vmem>>) attributes {dimension_semantics = [#tpu.dimension_semantics<parallel>], iteration_bounds = array<i64: 1>, scalar_prefetch = 0 : i64, scratch_operands = 0 : i64, tpu.core_type = #tpu.core_type<tc>, window_params = [{transform_indices = @transform_0, window_bounds = array<i64: 32, 18, 12>}, {pipeline_mode = #tpu.pipeline_mode<synchronous>, transform_indices = @transform_1, window_bounds = array<i64: 3, 12, 128>}, {transform_indices = @transform_2, window_bounds = array<i64: 512, 128>}, {transform_indices = @transform_3, window_bounds = array<i64: 1, 1, 128>}, {transform_indices = @transform_4, window_bounds = array<i64: 1, 1, 128>}]} {
    %cst = arith.constant 0.000000e+00 : f32
    %0 = vector.broadcast %cst : f32 to vector<512x128xf32>
    %c0 = arith.constant 0 : index
    %c0_0 = arith.constant 0 : index
    %c0_1 = arith.constant 0 : index
    %1 = vector.load %arg1[%c0, %c0_0, %c0_1] : memref<32x18x12xbf16, #tpu.memory_space<vmem>>, vector<32x16x12xbf16>
    %2 = vector.shape_cast %1 : vector<32x16x12xbf16> to vector<512x12xbf16>
    %c0_2 = arith.constant 0 : index
    %c0_3 = arith.constant 0 : index
    %c0_4 = arith.constant 0 : index
    %3 = vector.load %arg2[%c0_2, %c0_3, %c0_4] : memref<3x12x128xbf16, #tpu.memory_space<vmem>>, vector<1x12x128xbf16>
    %4 = vector.shape_cast %3 : vector<1x12x128xbf16> to vector<12x128xbf16>
    %cst_5 = arith.constant dense<0.000000e+00> : vector<512x128xf32>
    %5 = tpu.matmul %2, %4, %cst_5 {dimension_numbers = #tpu.dot_dimension_numbers<[1], [0], [0], [1], [0, 0, 1, 1], [], []>} : vector<512x12xbf16>, vector<12x128xbf16>, vector<512x128xf32> -> vector<512x128xf32>
    %6 = arith.addf %0, %5 : vector<512x128xf32>
    %c0_6 = arith.constant 0 : index
    %c1 = arith.constant 1 : index
    %c0_7 = arith.constant 0 : index
    %7 = vector.load %arg1[%c0_6, %c1, %c0_7] : memref<32x18x12xbf16, #tpu.memory_space<vmem>>, vector<32x16x12xbf16>
    %8 = vector.shape_cast %7 : vector<32x16x12xbf16> to vector<512x12xbf16>
    %c1_8 = arith.constant 1 : index
    %c0_9 = arith.constant 0 : index
    %c0_10 = arith.constant 0 : index
    %9 = vector.load %arg2[%c1_8, %c0_9, %c0_10] : memref<3x12x128xbf16, #tpu.memory_space<vmem>>, vector<1x12x128xbf16>
    %10 = vector.shape_cast %9 : vector<1x12x128xbf16> to vector<12x128xbf16>
    %cst_11 = arith.constant dense<0.000000e+00> : vector<512x128xf32>
    %11 = tpu.matmul %8, %10, %cst_11 {dimension_numbers = #tpu.dot_dimension_numbers<[1], [0], [0], [1], [0, 0, 1, 1], [], []>} : vector<512x12xbf16>, vector<12x128xbf16>, vector<512x128xf32> -> vector<512x128xf32>
    %12 = arith.addf %6, %11 : vector<512x128xf32>
    %c0_12 = arith.constant 0 : index
    %c2 = arith.constant 2 : index
    %c0_13 = arith.constant 0 : index
    %13 = vector.load %arg1[%c0_12, %c2, %c0_13] : memref<32x18x12xbf16, #tpu.memory_space<vmem>>, vector<32x16x12xbf16>
    %14 = vector.shape_cast %13 : vector<32x16x12xbf16> to vector<512x12xbf16>
    %c2_14 = arith.constant 2 : index
    %c0_15 = arith.constant 0 : index
    %c0_16 = arith.constant 0 : index
    %15 = vector.load %arg2[%c2_14, %c0_15, %c0_16] : memref<3x12x128xbf16, #tpu.memory_space<vmem>>, vector<1x12x128xbf16>
    %16 = vector.shape_cast %15 : vector<1x12x128xbf16> to vector<12x128xbf16>
    %cst_17 = arith.constant dense<0.000000e+00> : vector<512x128xf32>
    %17 = tpu.matmul %14, %16, %cst_17 {dimension_numbers = #tpu.dot_dimension_numbers<[1], [0], [0], [1], [0, 0, 1, 1], [], []>} : vector<512x12xbf16>, vector<12x128xbf16>, vector<512x128xf32> -> vector<512x128xf32>
    %18 = arith.addf %12, %17 : vector<512x128xf32>
    %c0_18 = arith.constant 0 : index
    %c0_19 = arith.constant 0 : index
    %19 = vector.load %arg3[%c0_18, %c0_19] : memref<512x128xf32, #tpu.memory_space<vmem>>, vector<512x128xf32>
    tpu.vector_store %arg3[%c0_18, %c0_19], %18 {strides = array<i32>} : memref<512x128xf32, #tpu.memory_space<vmem>>, vector<512x128xf32>,
    %cst_20 = arith.constant dense<0.000000e+00> : vector<128xf32>
    %20 = vector.multi_reduction <add>, %18, %cst_20 [0] : vector<512x128xf32> to vector<128xf32>
    %21 = vector.shape_cast %20 : vector<128xf32> to vector<1x128xf32>
    %22 = arith.mulf %18, %18 : vector<512x128xf32>
    %cst_21 = arith.constant dense<0.000000e+00> : vector<128xf32>
    %23 = vector.multi_reduction <add>, %22, %cst_21 [0] : vector<512x128xf32> to vector<128xf32>
    %24 = vector.shape_cast %23 : vector<128xf32> to vector<1x128xf32>
    %25 = vector.shape_cast %21 : vector<1x128xf32> to vector<1x1x128xf32>
    %c0_22 = arith.constant 0 : index
    %c0_23 = arith.constant 0 : index
    %c0_24 = arith.constant 0 : index
    %26 = vector.load %arg4[%c0_22, %c0_23, %c0_24] : memref<1x1x128xf32, #tpu.memory_space<vmem>>, vector<1x1x128xf32>
    tpu.vector_store %arg4[%c0_22, %c0_23, %c0_24], %25 {strides = array<i32>} : memref<1x1x128xf32, #tpu.memory_space<vmem>>, vector<1x1x128xf32>,
    %27 = vector.shape_cast %24 : vector<1x128xf32> to vector<1x1x128xf32>
    %c0_25 = arith.constant 0 : index
    %c0_26 = arith.constant 0 : index
    %c0_27 = arith.constant 0 : index
    %28 = vector.load %arg5[%c0_25, %c0_26, %c0_27] : memref<1x1x128xf32, #tpu.memory_space<vmem>>, vector<1x1x128xf32>
    tpu.vector_store %arg5[%c0_25, %c0_26, %c0_27], %27 {strides = array<i32>} : memref<1x1x128xf32, #tpu.memory_space<vmem>>, vector<1x1x128xf32>,
    return
  }
  func.func @transform_0(%arg0: i32) -> (i32, i32, i32) {
    %c0_i32 = arith.constant 0 : i32
    %c0_i32_0 = arith.constant 0 : i32
    %c0_i32_1 = arith.constant 0 : i32
    return %arg0, %c0_i32, %c0_i32_0 : i32, i32, i32
  }
  func.func @transform_1(%arg0: i32) -> (i32, i32, i32) {
    %c0_i32 = arith.constant 0 : i32
    %c0_i32_0 = arith.constant 0 : i32
    %c0_i32_1 = arith.constant 0 : i32
    %c0_i32_2 = arith.constant 0 : i32
    return %c0_i32, %c0_i32_0, %c0_i32_1 : i32, i32, i32
  }
  func.func @transform_2(%arg0: i32) -> (i32, i32) {
    %c0_i32 = arith.constant 0 : i32
    %c0_i32_0 = arith.constant 0 : i32
    return %arg0, %c0_i32 : i32, i32
  }
  func.func @transform_3(%arg0: i32) -> (i32, i32, i32) {
    %c0_i32 = arith.constant 0 : i32
    %c0_i32_0 = arith.constant 0 : i32
    %c0_i32_1 = arith.constant 0 : i32
    return %arg0, %c0_i32, %c0_i32_0 : i32, i32, i32
  }
  func.func @transform_4(%arg0: i32) -> (i32, i32, i32) {
    %c0_i32 = arith.constant 0 : i32
    %c0_i32_0 = arith.constant 0 : i32
    %c0_i32_1 = arith.constant 0 : i32
    return %arg0, %c0_i32, %c0_i32_0 : i32, i32, i32
  }
}

</mosaic_0001>

<llo_original>
// kernel: tpu_custom_call.1
$region0: #{tpu_custom_call.1}
  #allocation0 [shape = 'u32[]', space=smem, size = 0x4, offset = 0x4, fixed_abs, tag = 'smem constant byte address 0x4 - core index']
  #allocation1 [shape = 'u32[144,128]{1,0:T(1,128)}', space=vmem, size = 0x12000, scoped, tag = 'internal scratch']
  %s0 = inlined_call_operand.vmem [shape: bf16[32,18,12], index: 0, kind: input, shape index: {}]
  %s1 = inlined_call_operand.vmem [shape: bf16[3,12,128], index: 1, kind: input, shape index: {}]
  %s2 = inlined_call_operand.hbm [shape: f32[512,128], index: 2, kind: output, shape index: {0}]
  %s3 = inlined_call_operand.hbm [shape: f32[1,1,128], index: 3, kind: output, shape index: {1}]
  %s4 = inlined_call_operand.hbm [shape: f32[1,1,128], index: 4, kind: output, shape index: {2}]
  %5 = xla_tuple %s2, %s3, %s4
  %s6 = sld [smem:[#allocation0]]
  $region34: #{tpu_custom_call.1} parent=0
    _
  %s8 = ssub.s32 1, %s6
  %s9 = scalar_select 0, %s8, %s6
  $region1: #{tpu_custom_call.1} parent=0
    #allocation2 [shape = 'u8[262144]{0}', space=vmem, size = 0x40000, scoped, tag = 'output window, operand 0, single buffered']
    #allocation3 [shape = 's32[1]{0}', space=sflag, size = 0x4, scoped, tag = 'scoped memory for tpu_custom_call.1']
    #allocation4 [shape = 'u8[512]{0}', space=vmem, size = 0x400, scoped, tag = 'output window, operand 1, single buffered']
    #allocation5 [shape = 's32[1]{0}', space=sflag, size = 0x4, scoped, tag = 'scoped memory for tpu_custom_call.1']
    #allocation6 [shape = 'u8[512]{0}', space=vmem, size = 0x400, scoped, tag = 'output window, operand 2, single buffered']
    %10 = vsyncpa [#allocation3], 0
    %11 = vsyncpa [#allocation5], 0
    // Predicated region
    $region2: #{tpu_custom_call.1} parent=1 // pred_check
      _
    $region3: #{tpu_custom_call.1} parent=1 // pred_check_branch
      %13 = sbr.rel (0) target = $region5
    $region4: #{tpu_custom_call.1} parent=1 // pred_region
      _
    $region5: #{tpu_custom_call.1} parent=1 // pred_fallthru
      _
    // Predicated region
    $region6: #{tpu_custom_call.1} parent=1 // pred_check
      _
    $region7: #{tpu_custom_call.1} parent=1 // pred_check_branch
      %15 = sbr.rel (0) target = $region9
    $region8: #{tpu_custom_call.1} parent=1 // pred_region
      _
    $region9: #{tpu_custom_call.1} parent=1 // pred_fallthru
      _
    %v17 = vld [vmem:[%s0] sm:$0xf]
    %v18 = vld [vmem:[%s0 + $0x4] sm:$0xf]
    %v19 = vld [vmem:[%s0 + $0xc] sm:$0xf]
    %v20 = vld [vmem:[%s0 + $0x10] sm:$0xf]
    %v21 = vld [vmem:[%s0 + $0x18] sm:$0xf]
    %v22 = vld [vmem:[%s0 + $0x1c] sm:$0xf]
    %v23 = vld [vmem:[%s0 + $0x24] sm:$0xf]
    %v24 = vld [vmem:[%s0 + $0x28] sm:$0xf]
    %v25 = vld [vmem:[%s0 + $0x30] sm:$0xf]
    %v26 = vld [vmem:[%s0 + $0x34] sm:$0xf]
    %v27 = vld [vmem:[%s0 + $0x3c] sm:$0xf]
    %v28 = vld [vmem:[%s0 + $0x40] sm:$0xf]
    %v29 = vld [vmem:[%s0 + $0x48] sm:$0xf]
    %v30 = vld [vmem:[%s0 + $0x4c] sm:$0xf]
    %v31 = vld [vmem:[%s0 + $0x54] sm:$0xf]
    %v32 = vld [vmem:[%s0 + $0x58] sm:$0xf]
    %v33 = vld [vmem:[%s0 + $0x60] sm:$0xf]
    %v34 = vld [vmem:[%s0 + $0x64] sm:$0xf]
    %v35 = vld [vmem:[%s0 + $0x6c] sm:$0xf]
    %v36 = vld [vmem:[%s0 + $0x70] sm:$0xf]
    %v37 = vld [vmem:[%s0 + $0x78] sm:$0xf]
    %v38 = vld [vmem:[%s0 + $0x7c] sm:$0xf]
    %v39 = vld [vmem:[%s0 + $0x84] sm:$0xf]
    %v40 = vld [vmem:[%s0 + $0x88] sm:$0xf]
    %v41 = vld [vmem:[%s0 + $0x90] sm:$0xf]
    %v42 = vld [vmem:[%s0 + $0x94] sm:$0xf]
    %v43 = vld [vmem:[%s0 + $0x9c] sm:$0xf]
    %v44 = vld [vmem:[%s0 + $0xa0] sm:$0xf]
    %v45 = vld [vmem:[%s0 + $0xa8] sm:$0xf]
    %v46 = vld [vmem:[%s0 + $0xac] sm:$0xf]
    %v47 = vld [vmem:[%s0 + $0xb4] sm:$0xf]
    %v48 = vld [vmem:[%s0 + $0xb8] sm:$0xf]
    %v49 = vld [vmem:[%s0 + $0xc0] sm:$0xf]
    %v50 = vld [vmem:[%s0 + $0xc4] sm:$0xf]
    %v51 = vld [vmem:[%s0 + $0xcc] sm:$0xf]
    %v52 = vld [vmem:[%s0 + $0xd0] sm:$0xf]
    %v53 = vld [vmem:[%s0 + $0xd8] sm:$0xf]
    %v54 = vld [vmem:[%s0 + $0xdc] sm:$0xf]
    %v55 = vld [vmem:[%s0 + $0xe4] sm:$0xf]
    %v56 = vld [vmem:[%s0 + $0xe8] sm:$0xf]
    %v57 = vld [vmem:[%s0 + $0xf0] sm:$0xf]
    %v58 = vld [vmem:[%s0 + $0xf4] sm:$0xf]
    %v59 = vld [vmem:[%s0 + $0xfc] sm:$0xf]
    %v60 = vld [vmem:[%s0 + $0x100] sm:$0xf]
    %v61 = vld [vmem:[%s0 + $0x108] sm:$0xf]
    %v62 = vld [vmem:[%s0 + $0x10c] sm:$0xf]
    %v63 = vld [vmem:[%s0 + $0x114] sm:$0xf]
    %v64 = vld [vmem:[%s0 + $0x118] sm:$0xf]
    %v65 = vld [vmem:[%s0 + $0x120] sm:$0xf]
    %v66 = vld [vmem:[%s0 + $0x124] sm:$0xf]
    %v67 = vld [vmem:[%s0 + $0x12c] sm:$0xf]
    %v68 = vld [vmem:[%s0 + $0x130] sm:$0xf]
    %v69 = vld [vmem:[%s0 + $0x138] sm:$0xf]
    %v70 = vld [vmem:[%s0 + $0x13c] sm:$0xf]
    %v71 = vld [vmem:[%s0 + $0x144] sm:$0xf]
    %v72 = vld [vmem:[%s0 + $0x148] sm:$0xf]
    %v73 = vld [vmem:[%s0 + $0x150] sm:$0xf]
    %v74 = vld [vmem:[%s0 + $0x154] sm:$0xf]
    %v75 = vld [vmem:[%s0 + $0x15c] sm:$0xf]
    %v76 = vld [vmem:[%s0 + $0x160] sm:$0xf]
    %v77 = vld [vmem:[%s0 + $0x168] sm:$0xf]
    %v78 = vld [vmem:[%s0 + $0x16c] sm:$0xf]
    %v79 = vld [vmem:[%s0 + $0x174] sm:$0xf]
    %v80 = vld [vmem:[%s0 + $0x178] sm:$0xf]
    %v81 = vld [vmem:[%s1] sm:$0xf]
    %v82 = vld [vmem:[%s1 + $0x4] sm:$0x3]
    %v83 = vld [vmem:[%s0 + $0x8] sm:$0x1]
    %v84 = vld [vmem:[%s0 + $0x14] sm:$0x1]
    %v85 = vld [vmem:[%s0 + $0x20] sm:$0x1]
    %v86 = vld [vmem:[%s0 + $0x2c] sm:$0x1]
    %v87 = vld [vmem:[%s0 + $0x38] sm:$0x1]
    %v88 = vld [vmem:[%s0 + $0x44] sm:$0x1]
    %v89 = vld [vmem:[%s0 + $0x50] sm:$0x1]
    %v90 = vld [vmem:[%s0 + $0x5c] sm:$0x1]
    %v91 = vld [vmem:[%s0 + $0x68] sm:$0x1]
    %v92 = vld [vmem:[%s0 + $0x74] sm:$0x1]
    %v93 = vld [vmem:[%s0 + $0x80] sm:$0x1]
    %v94 = vld [vmem:[%s0 + $0x8c] sm:$0x1]
    %v95 = vld [vmem:[%s0 + $0x98] sm:$0x1]
    %v96 = vld [vmem:[%s0 + $0xa4] sm:$0x1]
    %v97 = vld [vmem:[%s0 + $0xb0] sm:$0x1]
    %v98 = vld [vmem:[%s0 + $0xbc] sm:$0x1]
    %v99 = vld [vmem:[%s0 + $0xc8] sm:$0x1]
    %v100 = vld [vmem:[%s0 + $0xd4] sm:$0x1]
    %v101 = vld [vmem:[%s0 + $0xe0] sm:$0x1]
    %v102 = vld [vmem:[%s0 + $0xec] sm:$0x1]
    %v103 = vld [vmem:[%s0 + $0xf8] sm:$0x1]
    %v104 = vld [vmem:[%s0 + $0x104] sm:$0x1]
    %v105 = vld [vmem:[%s0 + $0x110] sm:$0x1]
    %v106 = vld [vmem:[%s0 + $0x11c] sm:$0x1]
    %v107 = vld [vmem:[%s0 + $0x128] sm:$0x1]
    %v108 = vld [vmem:[%s0 + $0x134] sm:$0x1]
    %v109 = vld [vmem:[%s0 + $0x140] sm:$0x1]
    %v110 = vld [vmem:[%s0 + $0x14c] sm:$0x1]
    %v111 = vld [vmem:[%s0 + $0x158] sm:$0x1]
    %v112 = vld [vmem:[%s0 + $0x164] sm:$0x1]
    %v113 = vld [vmem:[%s0 + $0x170] sm:$0x1]
    %v114 = vld [vmem:[%s0 + $0x17c] sm:$0x1]
    %vm115 = vsmask.f32 3328
    %vm116 = vsmask.f32 7440
    %vm117 = vmor %vm115, %vm116
    %v119 = vshrl.u32 %v17, 16
    %v121 = vrot.slane %v119, 4
    %v122 = vshll.u32 %v17, 16
    %v124 = vrot.slane %v122, 5
    %v125 = vor.u32 %v121, %v124
    %v126 = vrot.slane %v125, 4
    %v128 = vshll.u32 %v18, 16
    %v130 = vrot.slane %v128, 5
    %v131 = vsel %vm117, %v126, %v130
    %v132 = vshrl.u32 %v18, 16
    %v134 = vrot.slane %v132, 4
    %v135 = vor.u32 %v134, %v130
    %v136 = vrot.slane %v135, 4
    %v138 = vshll.u32 %v83, 16
    %v140 = vrot.slane %v138, 5
    %v141 = vsel %vm117, %v136, %v140
    %v143 = vshrl.u32 %v19, 16
    %v145 = vrot.slane %v143, 4
    %v146 = vshll.u32 %v19, 16
    %v148 = vrot.slane %v146, 5
    %v149 = vor.u32 %v145, %v148
    %v150 = vrot.slane %v149, 4
    %v152 = vshll.u32 %v20, 16
    %v154 = vrot.slane %v152, 5
    %v155 = vsel %vm117, %v150, %v154
    %v156 = vshrl.u32 %v20, 16
    %v158 = vrot.slane %v156, 4
    %v159 = vor.u32 %v158, %v154
    %v160 = vrot.slane %v159, 4
    %v162 = vshll.u32 %v84, 16
    %v164 = vrot.slane %v162, 5
    %v165 = vsel %vm117, %v160, %v164
    %v167 = vshrl.u32 %v21, 16
    %v169 = vrot.slane %v167, 4
    %v170 = vshll.u32 %v21, 16
    %v172 = vrot.slane %v170, 5
    %v173 = vor.u32 %v169, %v172
    %v174 = vrot.slane %v173, 4
    %v176 = vshll.u32 %v22, 16
    %v178 = vrot.slane %v176, 5
    %v179 = vsel %vm117, %v174, %v178
    %v180 = vshrl.u32 %v22, 16
    %v182 = vrot.slane %v180, 4
    %v183 = vor.u32 %v182, %v178
    %v184 = vrot.slane %v183, 4
    %v186 = vshll.u32 %v85, 16
    %v188 = vrot.slane %v186, 5
    %v189 = vsel %vm117, %v184, %v188
    %v191 = vshrl.u32 %v23, 16
    %v193 = vrot.slane %v191, 4
    %v194 = vshll.u32 %v23, 16
    %v196 = vrot.slane %v194, 5
    %v197 = vor.u32 %v193, %v196
    %v198 = vrot.slane %v197, 4
    %v200 = vshll.u32 %v24, 16
    %v202 = vrot.slane %v200, 5
    %v203 = vsel %vm117, %v198, %v202
    %v204 = vshrl.u32 %v24, 16
    %v206 = vrot.slane %v204, 4
    %v207 = vor.u32 %v206, %v202
    %v208 = vrot.slane %v207, 4
    %v210 = vshll.u32 %v86, 16
    %v212 = vrot.slane %v210, 5
    %v213 = vsel %vm117, %v208, %v212
    %v215 = vshrl.u32 %v25, 16
    %v217 = vrot.slane %v215, 4
    %v218 = vshll.u32 %v25, 16
    %v220 = vrot.slane %v218, 5
    %v221 = vor.u32 %v217, %v220
    %v222 = vrot.slane %v221, 4
    %v224 = vshll.u32 %v26, 16
    %v226 = vrot.slane %v224, 5
    %v227 = vsel %vm117, %v222, %v226
    %v228 = vshrl.u32 %v26, 16
    %v230 = vrot.slane %v228, 4
    %v231 = vor.u32 %v230, %v226
    %v232 = vrot.slane %v231, 4
    %v234 = vshll.u32 %v87, 16
    %v236 = vrot.slane %v234, 5
    %v237 = vsel %vm117, %v232, %v236
    %v239 = vshrl.u32 %v27, 16
    %v241 = vrot.slane %v239, 4
    %v242 = vshll.u32 %v27, 16
    %v244 = vrot.slane %v242, 5
    %v245 = vor.u32 %v241, %v244
    %v246 = vrot.slane %v245, 4
    %v248 = vshll.u32 %v28, 16
    %v250 = vrot.slane %v248, 5
    %v251 = vsel %vm117, %v246, %v250
    %v252 = vshrl.u32 %v28, 16
    %v254 = vrot.slane %v252, 4
    %v255 = vor.u32 %v254, %v250
    %v256 = vrot.slane %v255, 4
    %v258 = vshll.u32 %v88, 16
    %v260 = vrot.slane %v258, 5
    %v261 = vsel %vm117, %v256, %v260
    %v263 = vshrl.u32 %v29, 16
    %v265 = vrot.slane %v263, 4
    %v266 = vshll.u32 %v29, 16
    %v268 = vrot.slane %v266, 5
    %v269 = vor.u32 %v265, %v268
    %v270 = vrot.slane %v269, 4
    %v272 = vshll.u32 %v30, 16
    %v274 = vrot.slane %v272, 5
    %v275 = vsel %vm117, %v270, %v274
    %v276 = vshrl.u32 %v30, 16
    %v278 = vrot.slane %v276, 4
    %v279 = vor.u32 %v278, %v274
    %v280 = vrot.slane %v279, 4
    %v282 = vshll.u32 %v89, 16
    %v284 = vrot.slane %v282, 5
    %v285 = vsel %vm117, %v280, %v284
    %v287 = vshrl.u32 %v31, 16
    %v289 = vrot.slane %v287, 4
    %v290 = vshll.u32 %v31, 16
    %v292 = vrot.slane %v290, 5
    %v293 = vor.u32 %v289, %v292
    %v294 = vrot.slane %v293, 4
    %v296 = vshll.u32 %v32, 16
    %v298 = vrot.slane %v296, 5
    %v299 = vsel %vm117, %v294, %v298
    %v300 = vshrl.u32 %v32, 16
    %v302 = vrot.slane %v300, 4
    %v303 = vor.u32 %v302, %v298
    %v304 = vrot.slane %v303, 4
    %v306 = vshll.u32 %v90, 16
    %v308 = vrot.slane %v306, 5
    %v309 = vsel %vm117, %v304, %v308
    %v311 = vshrl.u32 %v33, 16
    %v313 = vrot.slane %v311, 4
    %v314 = vshll.u32 %v33, 16
    %v316 = vrot.slane %v314, 5
    %v317 = vor.u32 %v313, %v316
    %v318 = vrot.slane %v317, 4
    %v320 = vshll.u32 %v34, 16
    %v322 = vrot.slane %v320, 5
    %v323 = vsel %vm117, %v318, %v322
    %v324 = vshrl.u32 %v34, 16
    %v326 = vrot.slane %v324, 4
    %v327 = vor.u32 %v326, %v322
    %v328 = vrot.slane %v327, 4
    %v330 = vshll.u32 %v91, 16
    %v332 = vrot.slane %v330, 5
    %v333 = vsel %vm117, %v328, %v332
    %v335 = vshrl.u32 %v35, 16
    %v337 = vrot.slane %v335, 4
    %v338 = vshll.u32 %v35, 16
    %v340 = vrot.slane %v338, 5
    %v341 = vor.u32 %v337, %v340
    %v342 = vrot.slane %v341, 4
    %v344 = vshll.u32 %v36, 16
    %v346 = vrot.slane %v344, 5
    %v347 = vsel %vm117, %v342, %v346
    %v348 = vshrl.u32 %v36, 16
    %v350 = vrot.slane %v348, 4
    %v351 = vor.u32 %v350, %v346
    %v352 = vrot.slane %v351, 4
    %v354 = vshll.u32 %v92, 16
    %v356 = vrot.slane %v354, 5
    %v357 = vsel %vm117, %v352, %v356
    %v359 = vshrl.u32 %v37, 16
    %v361 = vrot.slane %v359, 4
    %v362 = vshll.u32 %v37, 16
    %v364 = vrot.slane %v362, 5
    %v365 = vor.u32 %v361, %v364
    %v366 = vrot.slane %v365, 4
    %v368 = vshll.u32 %v38, 16
    %v370 = vrot.slane %v368, 5
    %v371 = vsel %vm117, %v366, %v370
    %v372 = vshrl.u32 %v38, 16
    %v374 = vrot.slane %v372, 4
    %v375 = vor.u32 %v374, %v370
    %v376 = vrot.slane %v375, 4
    %v378 = vshll.u32 %v93, 16
    %v380 = vrot.slane %v378, 5
    %v381 = vsel %vm117, %v376, %v380
    %v383 = vshrl.u32 %v39, 16
    %v385 = vrot.slane %v383, 4
    %v386 = vshll.u32 %v39, 16
    %v388 = vrot.slane %v386, 5
    %v389 = vor.u32 %v385, %v388
    %v390 = vrot.slane %v389, 4
    %v392 = vshll.u32 %v40, 16
    %v394 = vrot.slane %v392, 5
    %v395 = vsel %vm117, %v390, %v394
    %v396 = vshrl.u32 %v40, 16
    %v398 = vrot.slane %v396, 4
    %v399 = vor.u32 %v398, %v394
    %v400 = vrot.slane %v399, 4
    %v402 = vshll.u32 %v94, 16
    %v404 = vrot.slane %v402, 5
    %v405 = vsel %vm117, %v400, %v404
    %v407 = vshrl.u32 %v41, 16
    %v409 = vrot.slane %v407, 4
    %v410 = vshll.u32 %v41, 16
    %v412 = vrot.slane %v410, 5
    %v413 = vor.u32 %v409, %v412
    %v414 = vrot.slane %v413, 4
    %v416 = vshll.u32 %v42, 16
    %v418 = vrot.slane %v416, 5
    %v419 = vsel %vm117, %v414, %v418
    %v420 = vshrl.u32 %v42, 16
    %v422 = vrot.slane %v420, 4
    %v423 = vor.u32 %v422, %v418
    %v424 = vrot.slane %v423, 4
    %v426 = vshll.u32 %v95, 16
    %v428 = vrot.slane %v426, 5
    %v429 = vsel %vm117, %v424, %v428
    %v431 = vshrl.u32 %v43, 16
    %v433 = vrot.slane %v431, 4
    %v434 = vshll.u32 %v43, 16
    %v436 = vrot.slane %v434, 5
    %v437 = vor.u32 %v433, %v436
    %v438 = vrot.slane %v437, 4
    %v440 = vshll.u32 %v44, 16
    %v442 = vrot.slane %v440, 5
    %v443 = vsel %vm117, %v438, %v442
    %v444 = vshrl.u32 %v44, 16
    %v446 = vrot.slane %v444, 4
    %v447 = vor.u32 %v446, %v442
    %v448 = vrot.slane %v447, 4
    %v450 = vshll.u32 %v96, 16
    %v452 = vrot.slane %v450, 5
    %v453 = vsel %vm117, %v448, %v452
    %v455 = vshrl.u32 %v45, 16
    %v457 = vrot.slane %v455, 4
    %v458 = vshll.u32 %v45, 16
    %v460 = vrot.slane %v458, 5
    %v461 = vor.u32 %v457, %v460
    %v462 = vrot.slane %v461, 4
    %v464 = vshll.u32 %v46, 16
    %v466 = vrot.slane %v464, 5
    %v467 = vsel %vm117, %v462, %v466
    %v468 = vshrl.u32 %v46, 16
    %v470 = vrot.slane %v468, 4
    %v471 = vor.u32 %v470, %v466
    %v472 = vrot.slane %v471, 4
    %v474 = vshll.u32 %v97, 16
    %v476 = vrot.slane %v474, 5
    %v477 = vsel %vm117, %v472, %v476
    %v479 = vshrl.u32 %v47, 16
    %v481 = vrot.slane %v479, 4
    %v482 = vshll.u32 %v47, 16
    %v484 = vrot.slane %v482, 5
    %v485 = vor.u32 %v481, %v484
    %v486 = vrot.slane %v485, 4
    %v488 = vshll.u32 %v48, 16
    %v490 = vrot.slane %v488, 5
    %v491 = vsel %vm117, %v486, %v490
    %v492 = vshrl.u32 %v48, 16
    %v494 = vrot.slane %v492, 4
    %v495 = vor.u32 %v494, %v490
    %v496 = vrot.slane %v495, 4
    %v498 = vshll.u32 %v98, 16
    %v500 = vrot.slane %v498, 5
    %v501 = vsel %vm117, %v496, %v500
    %v503 = vshrl.u32 %v49, 16
    %v505 = vrot.slane %v503, 4
    %v506 = vshll.u32 %v49, 16
    %v508 = vrot.slane %v506, 5
    %v509 = vor.u32 %v505, %v508
    %v510 = vrot.slane %v509, 4
    %v512 = vshll.u32 %v50, 16
    %v514 = vrot.slane %v512, 5
    %v515 = vsel %vm117, %v510, %v514
    %v516 = vshrl.u32 %v50, 16
    %v518 = vrot.slane %v516, 4
    %v519 = vor.u32 %v518, %v514
    %v520 = vrot.slane %v519, 4
    %v522 = vshll.u32 %v99, 16
    %v524 = vrot.slane %v522, 5
    %v525 = vsel %vm117, %v520, %v524
    %v527 = vshrl.u32 %v51, 16
    %v529 = vrot.slane %v527, 4
    %v530 = vshll.u32 %v51, 16
    %v532 = vrot.slane %v530, 5
    %v533 = vor.u32 %v529, %v532
    %v534 = vrot.slane %v533, 4
    %v536 = vshll.u32 %v52, 16
    %v538 = vrot.slane %v536, 5
    %v539 = vsel %vm117, %v534, %v538
    %v540 = vshrl.u32 %v52, 16
    %v542 = vrot.slane %v540, 4
    %v543 = vor.u32 %v542, %v538
    %v544 = vrot.slane %v543, 4
    %v546 = vshll.u32 %v100, 16
    %v548 = vrot.slane %v546, 5
    %v549 = vsel %vm117, %v544, %v548
    %v551 = vshrl.u32 %v53, 16
    %v553 = vrot.slane %v551, 4
    %v554 = vshll.u32 %v53, 16
    %v556 = vrot.slane %v554, 5
    %v557 = vor.u32 %v553, %v556
    %v558 = vrot.slane %v557, 4
    %v560 = vshll.u32 %v54, 16
    %v562 = vrot.slane %v560, 5
    %v563 = vsel %vm117, %v558, %v562
    %v564 = vshrl.u32 %v54, 16
    %v566 = vrot.slane %v564, 4
    %v567 = vor.u32 %v566, %v562
    %v568 = vrot.slane %v567, 4
    %v570 = vshll.u32 %v101, 16
    %v572 = vrot.slane %v570, 5
    %v573 = vsel %vm117, %v568, %v572
    %v575 = vshrl.u32 %v55, 16
    %v577 = vrot.slane %v575, 4
    %v578 = vshll.u32 %v55, 16
    %v580 = vrot.slane %v578, 5
    %v581 = vor.u32 %v577, %v580
    %v582 = vrot.slane %v581, 4
    %v584 = vshll.u32 %v56, 16
    %v586 = vrot.slane %v584, 5
    %v587 = vsel %vm117, %v582, %v586
    %v588 = vshrl.u32 %v56, 16
    %v590 = vrot.slane %v588, 4
    %v591 = vor.u32 %v590, %v586
    %v592 = vrot.slane %v591, 4
    %v594 = vshll.u32 %v102, 16
    %v596 = vrot.slane %v594, 5
    %v597 = vsel %vm117, %v592, %v596
    %v599 = vshrl.u32 %v57, 16
    %v601 = vrot.slane %v599, 4
    %v602 = vshll.u32 %v57, 16
    %v604 = vrot.slane %v602, 5
    %v605 = vor.u32 %v601, %v604
    %v606 = vrot.slane %v605, 4
    %v608 = vshll.u32 %v58, 16
    %v610 = vrot.slane %v608, 5
    %v611 = vsel %vm117, %v606, %v610
    %v612 = vshrl.u32 %v58, 16
    %v614 = vrot.slane %v612, 4
    %v615 = vor.u32 %v614, %v610
    %v616 = vrot.slane %v615, 4
    %v618 = vshll.u32 %v103, 16
    %v620 = vrot.slane %v618, 5
    %v621 = vsel %vm117, %v616, %v620
    %v623 = vshrl.u32 %v59, 16
    %v625 = vrot.slane %v623, 4
    %v626 = vshll.u32 %v59, 16
    %v628 = vrot.slane %v626, 5
    %v629 = vor.u32 %v625, %v628
    %v630 = vrot.slane %v629, 4
    %v632 = vshll.u32 %v60, 16
    %v634 = vrot.slane %v632, 5
    %v635 = vsel %vm117, %v630, %v634
    %v636 = vshrl.u32 %v60, 16
    %v638 = vrot.slane %v636, 4
    %v639 = vor.u32 %v638, %v634
    %v640 = vrot.slane %v639, 4
    %v642 = vshll.u32 %v104, 16
    %v644 = vrot.slane %v642, 5
    %v645 = vsel %vm117, %v640, %v644
    %v647 = vshrl.u32 %v61, 16
    %v649 = vrot.slane %v647, 4
    %v650 = vshll.u32 %v61, 16
    %v652 = vrot.slane %v650, 5
    %v653 = vor.u32 %v649, %v652
    %v654 = vrot.slane %v653, 4
    %v656 = vshll.u32 %v62, 16
    %v658 = vrot.slane %v656, 5
    %v659 = vsel %vm117, %v654, %v658
    %v660 = vshrl.u32 %v62, 16
    %v662 = vrot.slane %v660, 4
    %v663 = vor.u32 %v662, %v658
    %v664 = vrot.slane %v663, 4
    %v666 = vshll.u32 %v105, 16
    %v668 = vrot.slane %v666, 5
    %v669 = vsel %vm117, %v664, %v668
    %v671 = vshrl.u32 %v63, 16
    %v673 = vrot.slane %v671, 4
    %v674 = vshll.u32 %v63, 16
    %v676 = vrot.slane %v674, 5
    %v677 = vor.u32 %v673, %v676
    %v678 = vrot.slane %v677, 4
    %v680 = vshll.u32 %v64, 16
    %v682 = vrot.slane %v680, 5
    %v683 = vsel %vm117, %v678, %v682
    %v684 = vshrl.u32 %v64, 16
    %v686 = vrot.slane %v684, 4
    %v687 = vor.u32 %v686, %v682
    %v688 = vrot.slane %v687, 4
    %v690 = vshll.u32 %v106, 16
    %v692 = vrot.slane %v690, 5
    %v693 = vsel %vm117, %v688, %v692
    %v695 = vshrl.u32 %v65, 16
    %v697 = vrot.slane %v695, 4
    %v698 = vshll.u32 %v65, 16
    %v700 = vrot.slane %v698, 5
    %v701 = vor.u32 %v697, %v700
    %v702 = vrot.slane %v701, 4
    %v704 = vshll.u32 %v66, 16
    %v706 = vrot.slane %v704, 5
    %v707 = vsel %vm117, %v702, %v706
    %v708 = vshrl.u32 %v66, 16
    %v710 = vrot.slane %v708, 4
    %v711 = vor.u32 %v710, %v706
    %v712 = vrot.slane %v711, 4
    %v714 = vshll.u32 %v107, 16
    %v716 = vrot.slane %v714, 5
    %v717 = vsel %vm117, %v712, %v716
    %v719 = vshrl.u32 %v67, 16
    %v721 = vrot.slane %v719, 4
    %v722 = vshll.u32 %v67, 16
    %v724 = vrot.slane %v722, 5
    %v725 = vor.u32 %v721, %v724
    %v726 = vrot.slane %v725, 4
    %v728 = vshll.u32 %v68, 16
    %v730 = vrot.slane %v728, 5
    %v731 = vsel %vm117, %v726, %v730
    %v732 = vshrl.u32 %v68, 16
    %v734 = vrot.slane %v732, 4
    %v735 = vor.u32 %v734, %v730
    %v736 = vrot.slane %v735, 4
    %v738 = vshll.u32 %v108, 16
    %v740 = vrot.slane %v738, 5
    %v741 = vsel %vm117, %v736, %v740
    %v743 = vshrl.u32 %v69, 16
    %v745 = vrot.slane %v743, 4
    %v746 = vshll.u32 %v69, 16
    %v748 = vrot.slane %v746, 5
    %v749 = vor.u32 %v745, %v748
    %v750 = vrot.slane %v749, 4
    %v752 = vshll.u32 %v70, 16
    %v754 = vrot.slane %v752, 5
    %v755 = vsel %vm117, %v750, %v754
    %v756 = vshrl.u32 %v70, 16
    %v758 = vrot.slane %v756, 4
    %v759 = vor.u32 %v758, %v754
    %v760 = vrot.slane %v759, 4
    %v762 = vshll.u32 %v109, 16
    %v764 = vrot.slane %v762, 5
    %v765 = vsel %vm117, %v760, %v764
    %v767 = vshrl.u32 %v71, 16
    %v769 = vrot.slane %v767, 4
    %v770 = vshll.u32 %v71, 16
    %v772 = vrot.slane %v770, 5
    %v773 = vor.u32 %v769, %v772
    %v774 = vrot.slane %v773, 4
    %v776 = vshll.u32 %v72, 16
    %v778 = vrot.slane %v776, 5
    %v779 = vsel %vm117, %v774, %v778
    %v780 = vshrl.u32 %v72, 16
    %v782 = vrot.slane %v780, 4
    %v783 = vor.u32 %v782, %v778
    %v784 = vrot.slane %v783, 4
    %v786 = vshll.u32 %v110, 16
    %v788 = vrot.slane %v786, 5
    %v789 = vsel %vm117, %v784, %v788
    %v791 = vshrl.u32 %v73, 16
    %v793 = vrot.slane %v791, 4
    %v794 = vshll.u32 %v73, 16
    %v796 = vrot.slane %v794, 5
    %v797 = vor.u32 %v793, %v796
    %v798 = vrot.slane %v797, 4
    %v800 = vshll.u32 %v74, 16
    %v802 = vrot.slane %v800, 5
    %v803 = vsel %vm117, %v798, %v802
    %v804 = vshrl.u32 %v74, 16
    %v806 = vrot.slane %v804, 4
    %v807 = vor.u32 %v806, %v802
    %v808 = vrot.slane %v807, 4
    %v810 = vshll.u32 %v111, 16
    %v812 = vrot.slane %v810, 5
    %v813 = vsel %vm117, %v808, %v812
    %v815 = vshrl.u32 %v75, 16
    %v817 = vrot.slane %v815, 4
    %v818 = vshll.u32 %v75, 16
    %v820 = vrot.slane %v818, 5
    %v821 = vor.u32 %v817, %v820
    %v822 = vrot.slane %v821, 4
    %v824 = vshll.u32 %v76, 16
    %v826 = vrot.slane %v824, 5
    %v827 = vsel %vm117, %v822, %v826
    %v828 = vshrl.u32 %v76, 16
    %v830 = vrot.slane %v828, 4
    %v831 = vor.u32 %v830, %v826
    %v832 = vrot.slane %v831, 4
    %v834 = vshll.u32 %v112, 16
    %v836 = vrot.slane %v834, 5
    %v837 = vsel %vm117, %v832, %v836
    %v839 = vshrl.u32 %v77, 16
    %v841 = vrot.slane %v839, 4
    %v842 = vshll.u32 %v77, 16
    %v844 = vrot.slane %v842, 5
    %v845 = vor.u32 %v841, %v844
    %v846 = vrot.slane %v845, 4
    %v848 = vshll.u32 %v78, 16
    %v850 = vrot.slane %v848, 5
    %v851 = vsel %vm117, %v846, %v850
    %v852 = vshrl.u32 %v78, 16
    %v854 = vrot.slane %v852, 4
    %v855 = vor.u32 %v854, %v850
    %v856 = vrot.slane %v855, 4
    %v858 = vshll.u32 %v113, 16
    %v860 = vrot.slane %v858, 5
    %v861 = vsel %vm117, %v856, %v860
    %v863 = vshrl.u32 %v79, 16
    %v865 = vrot.slane %v863, 4
    %v866 = vshll.u32 %v79, 16
    %v868 = vrot.slane %v866, 5
    %v869 = vor.u32 %v865, %v868
    %v870 = vrot.slane %v869, 4
    %v872 = vshll.u32 %v80, 16
    %v874 = vrot.slane %v872, 5
    %v875 = vsel %vm117, %v870, %v874
    %v876 = vshrl.u32 %v80, 16
    %v878 = vrot.slane %v876, 4
    %v879 = vor.u32 %v878, %v874
    %v880 = vrot.slane %v879, 4
    %v882 = vshll.u32 %v114, 16
    %v884 = vrot.slane %v882, 5
    %v885 = vsel %vm117, %v880, %v884
    %s886 = scalar_lea.vmem %s1, 8
    %v887 = vld [vmem:[%s886] sm:$0xf]
    %v888 = vld [vmem:[%s886 + $0x4] sm:$0x3]
    %v889 = vunpack.c.l.b16 %v131
    %v890 = vunpack.c.l.b16 %v141
    %v891 = vunpack.c.l.b16 %v155
    %v892 = vunpack.c.l.b16 %v165
    %v893 = vunpack.c.l.b16 %v179
    %v894 = vunpack.c.l.b16 %v189
    %v895 = vunpack.c.l.b16 %v203
    %v896 = vunpack.c.l.b16 %v213
    %v897 = vunpack.c.l.b16 %v227
    %v898 = vunpack.c.l.b16 %v237
    %v899 = vunpack.c.l.b16 %v251
    %v900 = vunpack.c.l.b16 %v261
    %v901 = vunpack.c.l.b16 %v275
    %v902 = vunpack.c.l.b16 %v285
    %v903 = vunpack.c.l.b16 %v299
    %v904 = vunpack.c.l.b16 %v309
    %v905 = vunpack.c.l.b16 %v323
    %v906 = vunpack.c.l.b16 %v333
    %v907 = vunpack.c.l.b16 %v347
    %v908 = vunpack.c.l.b16 %v357
    %v909 = vunpack.c.l.b16 %v371
    %v910 = vunpack.c.l.b16 %v381
    %v911 = vunpack.c.l.b16 %v395
    %v912 = vunpack.c.l.b16 %v405
    %v913 = vunpack.c.l.b16 %v419
    %v914 = vunpack.c.l.b16 %v429
    %v915 = vunpack.c.l.b16 %v443
    %v916 = vunpack.c.l.b16 %v453
    %v917 = vunpack.c.l.b16 %v467
    %v918 = vunpack.c.l.b16 %v477
    %v919 = vunpack.c.l.b16 %v491
    %v920 = vunpack.c.l.b16 %v501
    %v921 = vunpack.c.l.b16 %v515
    %v922 = vunpack.c.l.b16 %v525
    %v923 = vunpack.c.l.b16 %v539
    %v924 = vunpack.c.l.b16 %v549
    %v925 = vunpack.c.l.b16 %v563
    %v926 = vunpack.c.l.b16 %v573
    %v927 = vunpack.c.l.b16 %v587
    %v928 = vunpack.c.l.b16 %v597
    %v929 = vunpack.c.l.b16 %v611
    %v930 = vunpack.c.l.b16 %v621
    %v931 = vunpack.c.l.b16 %v635
    %v932 = vunpack.c.l.b16 %v645
    %v933 = vunpack.c.l.b16 %v659
    %v934 = vunpack.c.l.b16 %v669
    %v935 = vunpack.c.l.b16 %v683
    %v936 = vunpack.c.l.b16 %v693
    %v937 = vunpack.c.l.b16 %v707
    %v938 = vunpack.c.l.b16 %v717
    %v939 = vunpack.c.l.b16 %v731
    %v940 = vunpack.c.l.b16 %v741
    %v941 = vunpack.c.l.b16 %v755
    %v942 = vunpack.c.l.b16 %v765
    %v943 = vunpack.c.l.b16 %v779
    %v944 = vunpack.c.l.b16 %v789
    %v945 = vunpack.c.l.b16 %v803
    %v946 = vunpack.c.l.b16 %v813
    %v947 = vunpack.c.l.b16 %v827
    %v948 = vunpack.c.l.b16 %v837
    %v949 = vunpack.c.l.b16 %v851
    %v950 = vunpack.c.l.b16 %v861
    %v951 = vunpack.c.l.b16 %v875
    %v952 = vunpack.c.l.b16 %v885
    %v953 = vpack.c.b16 %v890, %v889
    %v954 = vpack.c.b16 %v892, %v891
    %v955 = vpack.c.b16 %v894, %v893
    %v956 = vpack.c.b16 %v896, %v895
    %v957 = vpack.c.b16 %v898, %v897
    %v958 = vpack.c.b16 %v900, %v899
    %v959 = vpack.c.b16 %v902, %v901
    %v960 = vpack.c.b16 %v904, %v903
    %v961 = vpack.c.b16 %v906, %v905
    %v962 = vpack.c.b16 %v908, %v907
    %v963 = vpack.c.b16 %v910, %v909
    %v964 = vpack.c.b16 %v912, %v911
    %v965 = vpack.c.b16 %v914, %v913
    %v966 = vpack.c.b16 %v916, %v915
    %v967 = vpack.c.b16 %v918, %v917
    %v968 = vpack.c.b16 %v920, %v919
    %v969 = vpack.c.b16 %v922, %v921
    %v970 = vpack.c.b16 %v924, %v923
    %v971 = vpack.c.b16 %v926, %v925
    %v972 = vpack.c.b16 %v928, %v927
    %v973 = vpack.c.b16 %v930, %v929
    %v974 = vpack.c.b16 %v932, %v931
    %v975 = vpack.c.b16 %v934, %v933
    %v976 = vpack.c.b16 %v936, %v935
    %v977 = vpack.c.b16 %v938, %v937
    %v978 = vpack.c.b16 %v940, %v939
    %v979 = vpack.c.b16 %v942, %v941
    %v980 = vpack.c.b16 %v944, %v943
    %v981 = vpack.c.b16 %v946, %v945
    %v982 = vpack.c.b16 %v948, %v947
    %v983 = vpack.c.b16 %v950, %v949
    %v984 = vpack.c.b16 %v952, %v951
    %v987 = vunpack.c.l.b16 %v887
    %v988 = vunpack.c.l.b16 %v888
    %v989 = vpack.c.b16 %v988, %v987
    %vm990 = vcmask 97280
    %v992 = vsel %vm990, %v953, 0
    %v995 = vsel %vm990, %v954, 0
    %v998 = vsel %vm990, %v955, 0
    %v1001 = vsel %vm990, %v956, 0
    %v1004 = vsel %vm990, %v957, 0
    %v1007 = vsel %vm990, %v958, 0
    %v1010 = vsel %vm990, %v959, 0
    %v1013 = vsel %vm990, %v960, 0
    %v1016 = vsel %vm990, %v961, 0
    %v1019 = vsel %vm990, %v962, 0
    %v1022 = vsel %vm990, %v963, 0
    %v1025 = vsel %vm990, %v964, 0
    %v1028 = vsel %vm990, %v965, 0
    %v1031 = vsel %vm990, %v966, 0
    %v1034 = vsel %vm990, %v967, 0
    %v1037 = vsel %vm990, %v968, 0
    %v1040 = vsel %vm990, %v969, 0
    %v1043 = vsel %vm990, %v970, 0
    %v1046 = vsel %vm990, %v971, 0
    %v1049 = vsel %vm990, %v972, 0
    %v1052 = vsel %vm990, %v973, 0
    %v1055 = vsel %vm990, %v974, 0
    %v1058 = vsel %vm990, %v975, 0
    %v1061 = vsel %vm990, %v976, 0
    %v1064 = vsel %vm990, %v977, 0
    %v1067 = vsel %vm990, %v978, 0
    %v1070 = vsel %vm990, %v979, 0
    %v1073 = vsel %vm990, %v980, 0
    %v1076 = vsel %vm990, %v981, 0
    %v1079 = vsel %vm990, %v982, 0
    %v1082 = vsel %vm990, %v983, 0
    %v1085 = vsel %vm990, %v984, 0
    %vm1087 = vcmask 1045504
    %v1089 = vsel %vm1087, %v989, 0
    %1091 = vmatprep.subr.bf16.mxu0 0
    %1092 = vmatpush1.bf16.msra.mxu0 0
    %1093 = vmatprep.subr.bf16.mxu0 0
    %1094 = vmatpush1.bf16.msra.mxu0 0
    %1095 = vmatprep.subr.bf16.mxu0 0
    %1096 = vmatpush1.bf16.msra.mxu0 0
    %1097 = vmatprep.subr.bf16.mxu0 0
    %1098 = vmatpush1.bf16.msra.mxu0 0
    %1099 = vmatprep.subr.bf16.mxu0 0
    %1100 = vmatpush1.bf16.msra.mxu0 0
    %1101 = vmatprep.subr.bf16.mxu0 0
    %1102 = vmatpush1.bf16.msra.mxu0 0
    %1103 = vmatprep.subr.bf16.mxu0 0
    %1104 = vmatpush1.bf16.msra.mxu0 0
    %1105 = vmatprep.subr.bf16.mxu0 0
    %1106 = vmatpush1.bf16.msra.mxu0 %v1089
    %1107 = vmatprep.subr.bf16.mxu0 0
    %1108 = vmatpush2.bf16.msra.mxu0 0
    %1109 = vmatprep.subr.bf16.mxu0 0
    %1110 = vmatpush2.bf16.msra.mxu0 0
    %1111 = vmatprep.subr.bf16.mxu0 0
    %1112 = vmatpush2.bf16.msra.mxu0 0
    %1113 = vmatprep.subr.bf16.mxu0 0
    %1114 = vmatpush2.bf16.msra.mxu0 0
    %1115 = vmatprep.subr.bf16.mxu0 0
    %1116 = vmatpush2.bf16.msra.mxu0 0
    %1117 = vmatprep.subr.bf16.mxu0 0
    %1118 = vmatpush2.bf16.msra.mxu0 0
    %1119 = vmatprep.subr.bf16.mxu0 0
    %1120 = vmatpush2.bf16.msra.mxu0 0
    %1121 = vmatprep.subr.bf16.mxu0 0
    %1122 = vmatpush2.bf16.msra.mxu0 0
    %1123 = vmatprep.mubr.bf16.mxu0 0
    %1124 = vmatmul.mubr.bf16.gmra.mxu0 %v992
    %v1125 = vpop.f32.mrf.mxu0
    %v1126 = vadd.f32 0.0, %v1125
    %v1127 = vpop.f32.mrf.mxu0
    %v1128 = vpop.f32.mrf.mxu0
    %v1129 = vadd.f32 0.0, %v1128
    %v1130 = vpop.f32.mrf.mxu0
    %1131 = vmatprep.mubr.bf16.mxu0 0
    %1132 = vmatmul.mubr.bf16.gmra.mxu0 %v995
    %v1133 = vpop.f32.mrf.mxu0
    %v1134 = vadd.f32 0.0, %v1133
    %v1135 = vpop.f32.mrf.mxu0
    %v1136 = vpop.f32.mrf.mxu0
    %v1137 = vadd.f32 0.0, %v1136
    %v1138 = vpop.f32.mrf.mxu0
    %1139 = vmatprep.mubr.bf16.mxu0 0
    %1140 = vmatmul.mubr.bf16.gmra.mxu0 %v998
    %v1141 = vpop.f32.mrf.mxu0
    %v1142 = vadd.f32 0.0, %v1141
    %v1143 = vpop.f32.mrf.mxu0
    %v1144 = vpop.f32.mrf.mxu0
    %v1145 = vadd.f32 0.0, %v1144
    %v1146 = vpop.f32.mrf.mxu0
    %1147 = vmatprep.mubr.bf16.mxu0 0
    %1148 = vmatmul.mubr.bf16.gmra.mxu0 %v1001
    %v1149 = vpop.f32.mrf.mxu0
    %v1150 = vadd.f32 0.0, %v1149
    %v1151 = vpop.f32.mrf.mxu0
    %v1152 = vpop.f32.mrf.mxu0
    %v1153 = vadd.f32 0.0, %v1152
    %v1154 = vpop.f32.mrf.mxu0
    %1155 = vmatprep.mubr.bf16.mxu0 0
    %1156 = vmatmul.mubr.bf16.gmra.mxu0 %v1004
    %v1157 = vpop.f32.mrf.mxu0
    %v1158 = vadd.f32 0.0, %v1157
    %v1159 = vpop.f32.mrf.mxu0
    %v1160 = vpop.f32.mrf.mxu0
    %v1161 = vadd.f32 0.0, %v1160
    %v1162 = vpop.f32.mrf.mxu0
    %1163 = vmatprep.mubr.bf16.mxu0 0
    %1164 = vmatmul.mubr.bf16.gmra.mxu0 %v1007
    %v1165 = vpop.f32.mrf.mxu0
    %v1166 = vadd.f32 0.0, %v1165
    %v1167 = vpop.f32.mrf.mxu0
    %v1168 = vpop.f32.mrf.mxu0
    %v1169 = vadd.f32 0.0, %v1168
    %v1170 = vpop.f32.mrf.mxu0
    %1171 = vmatprep.mubr.bf16.mxu0 0
    %1172 = vmatmul.mubr.bf16.gmra.mxu0 %v1010
    %v1173 = vpop.f32.mrf.mxu0
    %v1174 = vadd.f32 0.0, %v1173
    %v1175 = vpop.f32.mrf.mxu0
    %v1176 = vpop.f32.mrf.mxu0
    %v1177 = vadd.f32 0.0, %v1176
    %v1178 = vpop.f32.mrf.mxu0
    %1179 = vmatprep.mubr.bf16.mxu0 0
    %1180 = vmatmul.mubr.bf16.gmra.mxu0 %v1013
    %v1181 = vpop.f32.mrf.mxu0
    %v1182 = vadd.f32 0.0, %v1181
    %v1183 = vpop.f32.mrf.mxu0
    %v1184 = vpop.f32.mrf.mxu0
    %v1185 = vadd.f32 0.0, %v1184
    %v1186 = vpop.f32.mrf.mxu0
    %1187 = vmatprep.mubr.bf16.mxu0 0
    %1188 = vmatmul.mubr.bf16.gmra.mxu0 %v1016
    %v1189 = vpop.f32.mrf.mxu0
    %v1190 = vadd.f32 0.0, %v1189
    %v1191 = vpop.f32.mrf.mxu0
    %v1192 = vpop.f32.mrf.mxu0
    %v1193 = vadd.f32 0.0, %v1192
    %v1194 = vpop.f32.mrf.mxu0
    %1195 = vmatprep.mubr.bf16.mxu0 0
    %1196 = vmatmul.mubr.bf16.gmra.mxu0 %v1019
    %v1197 = vpop.f32.mrf.mxu0
    %v1198 = vadd.f32 0.0, %v1197
    %v1199 = vpop.f32.mrf.mxu0
    %v1200 = vpop.f32.mrf.mxu0
    %v1201 = vadd.f32 0.0, %v1200
    %v1202 = vpop.f32.mrf.mxu0
    %1203 = vmatprep.mubr.bf16.mxu0 0
    %1204 = vmatmul.mubr.bf16.gmra.mxu0 %v1022
    %v1205 = vpop.f32.mrf.mxu0
    %v1206 = vadd.f32 0.0, %v1205
    %v1207 = vpop.f32.mrf.mxu0
    %v1208 = vpop.f32.mrf.mxu0
    %v1209 = vadd.f32 0.0, %v1208
    %v1210 = vpop.f32.mrf.mxu0
    %1211 = vmatprep.mubr.bf16.mxu0 0
    %1212 = vmatmul.mubr.bf16.gmra.mxu0 %v1025
    %v1213 = vpop.f32.mrf.mxu0
    %v1214 = vadd.f32 0.0, %v1213
    %v1215 = vpop.f32.mrf.mxu0
    %v1216 = vpop.f32.mrf.mxu0
    %v1217 = vadd.f32 0.0, %v1216
    %v1218 = vpop.f32.mrf.mxu0
    %1219 = vmatprep.mubr.bf16.mxu0 0
    %1220 = vmatmul.mubr.bf16.gmra.mxu0 %v1028
    %v1221 = vpop.f32.mrf.mxu0
    %v1222 = vadd.f32 0.0, %v1221
    %v1223 = vpop.f32.mrf.mxu0
    %v1224 = vpop.f32.mrf.mxu0
    %v1225 = vadd.f32 0.0, %v1224
    %v1226 = vpop.f32.mrf.mxu0
    %1227 = vmatprep.mubr.bf16.mxu0 0
    %1228 = vmatmul.mubr.bf16.gmra.mxu0 %v1031
    %v1229 = vpop.f32.mrf.mxu0
    %v1230 = vadd.f32 0.0, %v1229
    %v1231 = vpop.f32.mrf.mxu0
    %v1232 = vpop.f32.mrf.mxu0
    %v1233 = vadd.f32 0.0, %v1232
    %v1234 = vpop.f32.mrf.mxu0
    %1235 = vmatprep.mubr.bf16.mxu0 0
    %1236 = vmatmul.mubr.bf16.gmra.mxu0 %v1034
    %v1237 = vpop.f32.mrf.mxu0
    %v1238 = vadd.f32 0.0, %v1237
    %v1239 = vpop.f32.mrf.mxu0
    %v1240 = vpop.f32.mrf.mxu0
    %v1241 = vadd.f32 0.0, %v1240
    %v1242 = vpop.f32.mrf.mxu0
    %1243 = vmatprep.mubr.bf16.mxu0 0
    %1244 = vmatmul.mubr.bf16.gmra.mxu0 %v1037
    %v1245 = vpop.f32.mrf.mxu0
    %v1246 = vadd.f32 0.0, %v1245
    %v1247 = vpop.f32.mrf.mxu0
    %v1248 = vpop.f32.mrf.mxu0
    %v1249 = vadd.f32 0.0, %v1248
    %v1250 = vpop.f32.mrf.mxu0
    %1251 = vmatprep.mubr.bf16.mxu0 0
    %1252 = vmatmul.mubr.bf16.gmra.mxu0 %v1040
    %v1253 = vpop.f32.mrf.mxu0
    %v1254 = vadd.f32 0.0, %v1253
    %v1255 = vpop.f32.mrf.mxu0
    %v1256 = vpop.f32.mrf.mxu0
    %v1257 = vadd.f32 0.0, %v1256
    %v1258 = vpop.f32.mrf.mxu0
    %1259 = vmatprep.mubr.bf16.mxu0 0
    %1260 = vmatmul.mubr.bf16.gmra.mxu0 %v1043
    %v1261 = vpop.f32.mrf.mxu0
    %v1262 = vadd.f32 0.0, %v1261
    %v1263 = vpop.f32.mrf.mxu0
    %v1264 = vpop.f32.mrf.mxu0
    %v1265 = vadd.f32 0.0, %v1264
    %v1266 = vpop.f32.mrf.mxu0
    %1267 = vmatprep.mubr.bf16.mxu0 0
    %1268 = vmatmul.mubr.bf16.gmra.mxu0 %v1046
    %v1269 = vpop.f32.mrf.mxu0
    %v1270 = vadd.f32 0.0, %v1269
    %v1271 = vpop.f32.mrf.mxu0
    %v1272 = vpop.f32.mrf.mxu0
    %v1273 = vadd.f32 0.0, %v1272
    %v1274 = vpop.f32.mrf.mxu0
    %1275 = vmatprep.mubr.bf16.mxu0 0
    %1276 = vmatmul.mubr.bf16.gmra.mxu0 %v1049
    %v1277 = vpop.f32.mrf.mxu0
    %v1278 = vadd.f32 0.0, %v1277
    %v1279 = vpop.f32.mrf.mxu0
    %v1280 = vpop.f32.mrf.mxu0
    %v1281 = vadd.f32 0.0, %v1280
    %v1282 = vpop.f32.mrf.mxu0
    %1283 = vmatprep.mubr.bf16.mxu0 0
    %1284 = vmatmul.mubr.bf16.gmra.mxu0 %v1052
    %v1285 = vpop.f32.mrf.mxu0
    %v1286 = vadd.f32 0.0, %v1285
    %v1287 = vpop.f32.mrf.mxu0
    %v1288 = vpop.f32.mrf.mxu0
    %v1289 = vadd.f32 0.0, %v1288
    %v1290 = vpop.f32.mrf.mxu0
    %1291 = vmatprep.mubr.bf16.mxu0 0
    %1292 = vmatmul.mubr.bf16.gmra.mxu0 %v1055
    %v1293 = vpop.f32.mrf.mxu0
    %v1294 = vadd.f32 0.0, %v1293
    %v1295 = vpop.f32.mrf.mxu0
    %v1296 = vpop.f32.mrf.mxu0
    %v1297 = vadd.f32 0.0, %v1296
    %v1298 = vpop.f32.mrf.mxu0
    %1299 = vmatprep.mubr.bf16.mxu0 0
    %1300 = vmatmul.mubr.bf16.gmra.mxu0 %v1058
    %v1301 = vpop.f32.mrf.mxu0
    %v1302 = vadd.f32 0.0, %v1301
    %v1303 = vpop.f32.mrf.mxu0
    %v1304 = vpop.f32.mrf.mxu0
    %v1305 = vadd.f32 0.0, %v1304
    %v1306 = vpop.f32.mrf.mxu0
    %1307 = vmatprep.mubr.bf16.mxu0 0
    %1308 = vmatmul.mubr.bf16.gmra.mxu0 %v1061
    %v1309 = vpop.f32.mrf.mxu0
    %v1310 = vadd.f32 0.0, %v1309
    %v1311 = vpop.f32.mrf.mxu0
    %v1312 = vpop.f32.mrf.mxu0
    %v1313 = vadd.f32 0.0, %v1312
    %v1314 = vpop.f32.mrf.mxu0
    %1315 = vmatprep.mubr.bf16.mxu0 0
    %1316 = vmatmul.mubr.bf16.gmra.mxu0 %v1064
    %v1317 = vpop.f32.mrf.mxu0
    %v1318 = vadd.f32 0.0, %v1317
    %v1319 = vpop.f32.mrf.mxu0
    %v1320 = vpop.f32.mrf.mxu0
    %v1321 = vadd.f32 0.0, %v1320
    %v1322 = vpop.f32.mrf.mxu0
    %1323 = vmatprep.mubr.bf16.mxu0 0
    %1324 = vmatmul.mubr.bf16.gmra.mxu0 %v1067
    %v1325 = vpop.f32.mrf.mxu0
    %v1326 = vadd.f32 0.0, %v1325
    %v1327 = vpop.f32.mrf.mxu0
    %v1328 = vpop.f32.mrf.mxu0
    %v1329 = vadd.f32 0.0, %v1328
    %v1330 = vpop.f32.mrf.mxu0
    %1331 = vmatprep.mubr.bf16.mxu0 0
    %1332 = vmatmul.mubr.bf16.gmra.mxu0 %v1070
    %v1333 = vpop.f32.mrf.mxu0
    %v1334 = vadd.f32 0.0, %v1333
    %v1335 = vpop.f32.mrf.mxu0
    %v1336 = vpop.f32.mrf.mxu0
    %v1337 = vadd.f32 0.0, %v1336
    %v1338 = vpop.f32.mrf.mxu0
    %1339 = vmatprep.mubr.bf16.mxu0 0
    %1340 = vmatmul.mubr.bf16.gmra.mxu0 %v1073
    %v1341 = vpop.f32.mrf.mxu0
    %v1342 = vadd.f32 0.0, %v1341
    %v1343 = vpop.f32.mrf.mxu0
    %v1344 = vpop.f32.mrf.mxu0
    %v1345 = vadd.f32 0.0, %v1344
    %v1346 = vpop.f32.mrf.mxu0
    %1347 = vmatprep.mubr.bf16.mxu0 0
    %1348 = vmatmul.mubr.bf16.gmra.mxu0 %v1076
    %v1349 = vpop.f32.mrf.mxu0
    %v1350 = vadd.f32 0.0, %v1349
    %v1351 = vpop.f32.mrf.mxu0
    %v1352 = vpop.f32.mrf.mxu0
    %v1353 = vadd.f32 0.0, %v1352
    %v1354 = vpop.f32.mrf.mxu0
    %1355 = vmatprep.mubr.bf16.mxu0 0
    %1356 = vmatmul.mubr.bf16.gmra.mxu0 %v1079
    %v1357 = vpop.f32.mrf.mxu0
    %v1358 = vadd.f32 0.0, %v1357
    %v1359 = vpop.f32.mrf.mxu0
    %v1360 = vpop.f32.mrf.mxu0
    %v1361 = vadd.f32 0.0, %v1360
    %v1362 = vpop.f32.mrf.mxu0
    %1363 = vmatprep.mubr.bf16.mxu0 0
    %1364 = vmatmul.mubr.bf16.gmra.mxu0 %v1082
    %v1365 = vpop.f32.mrf.mxu0
    %v1366 = vadd.f32 0.0, %v1365
    %v1367 = vpop.f32.mrf.mxu0
    %v1368 = vpop.f32.mrf.mxu0
    %v1369 = vadd.f32 0.0, %v1368
    %v1370 = vpop.f32.mrf.mxu0
    %1371 = vmatprep.mubr.bf16.mxu0 0
    %1372 = vmatmul.mubr.bf16.gmra.mxu0 %v1085
    %v1373 = vpop.f32.mrf.mxu0
    %v1374 = vadd.f32 0.0, %v1373
    %v1375 = vpop.f32.mrf.mxu0
    %v1376 = vpop.f32.mrf.mxu0
    %v1377 = vadd.f32 0.0, %v1376
    %v1378 = vpop.f32.mrf.mxu0
    %1379 = vdwg.mxu0
    %v1444 = vunpack.c.l.b16 %v17
    %v1445 = vunpack.c.l.b16 %v18
    %v1446 = vunpack.c.l.b16 %v19
    %v1447 = vunpack.c.l.b16 %v20
    %v1448 = vunpack.c.l.b16 %v21
    %v1449 = vunpack.c.l.b16 %v22
    %v1450 = vunpack.c.l.b16 %v23
    %v1451 = vunpack.c.l.b16 %v24
    %v1452 = vunpack.c.l.b16 %v25
    %v1453 = vunpack.c.l.b16 %v26
    %v1454 = vunpack.c.l.b16 %v27
    %v1455 = vunpack.c.l.b16 %v28
    %v1456 = vunpack.c.l.b16 %v29
    %v1457 = vunpack.c.l.b16 %v30
    %v1458 = vunpack.c.l.b16 %v31
    %v1459 = vunpack.c.l.b16 %v32
    %v1460 = vunpack.c.l.b16 %v33
    %v1461 = vunpack.c.l.b16 %v34
    %v1462 = vunpack.c.l.b16 %v35
    %v1463 = vunpack.c.l.b16 %v36
    %v1464 = vunpack.c.l.b16 %v37
    %v1465 = vunpack.c.l.b16 %v38
    %v1466 = vunpack.c.l.b16 %v39
    %v1467 = vunpack.c.l.b16 %v40
    %v1468 = vunpack.c.l.b16 %v41
    %v1469 = vunpack.c.l.b16 %v42
    %v1470 = vunpack.c.l.b16 %v43
    %v1471 = vunpack.c.l.b16 %v44
    %v1472 = vunpack.c.l.b16 %v45
    %v1473 = vunpack.c.l.b16 %v46
    %v1474 = vunpack.c.l.b16 %v47
    %v1475 = vunpack.c.l.b16 %v48
    %v1476 = vunpack.c.l.b16 %v49
    %v1477 = vunpack.c.l.b16 %v50
    %v1478 = vunpack.c.l.b16 %v51
    %v1479 = vunpack.c.l.b16 %v52
    %v1480 = vunpack.c.l.b16 %v53
    %v1481 = vunpack.c.l.b16 %v54
    %v1482 = vunpack.c.l.b16 %v55
    %v1483 = vunpack.c.l.b16 %v56
    %v1484 = vunpack.c.l.b16 %v57
    %v1485 = vunpack.c.l.b16 %v58
    %v1486 = vunpack.c.l.b16 %v59
    %v1487 = vunpack.c.l.b16 %v60
    %v1488 = vunpack.c.l.b16 %v61
    %v1489 = vunpack.c.l.b16 %v62
    %v1490 = vunpack.c.l.b16 %v63
    %v1491 = vunpack.c.l.b16 %v64
    %v1492 = vunpack.c.l.b16 %v65
    %v1493 = vunpack.c.l.b16 %v66
    %v1494 = vunpack.c.l.b16 %v67
    %v1495 = vunpack.c.l.b16 %v68
    %v1496 = vunpack.c.l.b16 %v69
    %v1497 = vunpack.c.l.b16 %v70
    %v1498 = vunpack.c.l.b16 %v71
    %v1499 = vunpack.c.l.b16 %v72
    %v1500 = vunpack.c.l.b16 %v73
    %v1501 = vunpack.c.l.b16 %v74
    %v1502 = vunpack.c.l.b16 %v75
    %v1503 = vunpack.c.l.b16 %v76
    %v1504 = vunpack.c.l.b16 %v77
    %v1505 = vunpack.c.l.b16 %v78
    %v1506 = vunpack.c.l.b16 %v79
    %v1507 = vunpack.c.l.b16 %v80
    %v1508 = vpack.c.b16 %v1445, %v1444
    %v1509 = vpack.c.b16 %v1447, %v1446
    %v1510 = vpack.c.b16 %v1449, %v1448
    %v1511 = vpack.c.b16 %v1451, %v1450
    %v1512 = vpack.c.b16 %v1453, %v1452
    %v1513 = vpack.c.b16 %v1455, %v1454
    %v1514 = vpack.c.b16 %v1457, %v1456
    %v1515 = vpack.c.b16 %v1459, %v1458
    %v1516 = vpack.c.b16 %v1461, %v1460
    %v1517 = vpack.c.b16 %v1463, %v1462
    %v1518 = vpack.c.b16 %v1465, %v1464
    %v1519 = vpack.c.b16 %v1467, %v1466
    %v1520 = vpack.c.b16 %v1469, %v1468
    %v1521 = vpack.c.b16 %v1471, %v1470
    %v1522 = vpack.c.b16 %v1473, %v1472
    %v1523 = vpack.c.b16 %v1475, %v1474
    %v1524 = vpack.c.b16 %v1477, %v1476
    %v1525 = vpack.c.b16 %v1479, %v1478
    %v1526 = vpack.c.b16 %v1481, %v1480
    %v1527 = vpack.c.b16 %v1483, %v1482
    %v1528 = vpack.c.b16 %v1485, %v1484
    %v1529 = vpack.c.b16 %v1487, %v1486
    %v1530 = vpack.c.b16 %v1489, %v1488
    %v1531 = vpack.c.b16 %v1491, %v1490
    %v1532 = vpack.c.b16 %v1493, %v1492
    %v1533 = vpack.c.b16 %v1495, %v1494
    %v1534 = vpack.c.b16 %v1497, %v1496
    %v1535 = vpack.c.b16 %v1499, %v1498
    %v1536 = vpack.c.b16 %v1501, %v1500
    %v1537 = vpack.c.b16 %v1503, %v1502
    %v1538 = vpack.c.b16 %v1505, %v1504
    %v1539 = vpack.c.b16 %v1507, %v1506
    %v1542 = vunpack.c.l.b16 %v81
    %v1543 = vunpack.c.l.b16 %v82
    %v1544 = vpack.c.b16 %v1543, %v1542
    %v1546 = vsel %vm990, %v1508, 0
    %v1549 = vsel %vm990, %v1509, 0
    %v1552 = vsel %vm990, %v1510, 0
    %v1555 = vsel %vm990, %v1511, 0
    %v1558 = vsel %vm990, %v1512, 0
    %v1561 = vsel %vm990, %v1513, 0
    %v1564 = vsel %vm990, %v1514, 0
    %v1567 = vsel %vm990, %v1515, 0
    %v1570 = vsel %vm990, %v1516, 0
    %v1573 = vsel %vm990, %v1517, 0
    %v1576 = vsel %vm990, %v1518, 0
    %v1579 = vsel %vm990, %v1519, 0
    %v1582 = vsel %vm990, %v1520, 0
    %v1585 = vsel %vm990, %v1521, 0
    %v1588 = vsel %vm990, %v1522, 0
    %v1591 = vsel %vm990, %v1523, 0
    %v1594 = vsel %vm990, %v1524, 0
    %v1597 = vsel %vm990, %v1525, 0
    %v1600 = vsel %vm990, %v1526, 0
    %v1603 = vsel %vm990, %v1527, 0
    %v1606 = vsel %vm990, %v1528, 0
    %v1609 = vsel %vm990, %v1529, 0
    %v1612 = vsel %vm990, %v1530, 0
    %v1615 = vsel %vm990, %v1531, 0
    %v1618 = vsel %vm990, %v1532, 0
    %v1621 = vsel %vm990, %v1533, 0
    %v1624 = vsel %vm990, %v1534, 0
    %v1627 = vsel %vm990, %v1535, 0
    %v1630 = vsel %vm990, %v1536, 0
    %v1633 = vsel %vm990, %v1537, 0
    %v1636 = vsel %vm990, %v1538, 0
    %v1639 = vsel %vm990, %v1539, 0
    %v1642 = vsel %vm1087, %v1544, 0
    %1644 = vmatprep.subr.bf16.mxu0 0
    %1645 = vmatpush1.bf16.msra.mxu0 0
    %1646 = vmatprep.subr.bf16.mxu0 0
    %1647 = vmatpush1.bf16.msra.mxu0 0
    %1648 = vmatprep.subr.bf16.mxu0 0
    %1649 = vmatpush1.bf16.msra.mxu0 0
    %1650 = vmatprep.subr.bf16.mxu0 0
    %1651 = vmatpush1.bf16.msra.mxu0 0
    %1652 = vmatprep.subr.bf16.mxu0 0
    %1653 = vmatpush1.bf16.msra.mxu0 0
    %1654 = vmatprep.subr.bf16.mxu0 0
    %1655 = vmatpush1.bf16.msra.mxu0 0
    %1656 = vmatprep.subr.bf16.mxu0 0
    %1657 = vmatpush1.bf16.msra.mxu0 0
    %1658 = vmatprep.subr.bf16.mxu0 0
    %1659 = vmatpush1.bf16.msra.mxu0 %v1642
    %1660 = vmatprep.subr.bf16.mxu0 0
    %1661 = vmatpush2.bf16.msra.mxu0 0
    %1662 = vmatprep.subr.bf16.mxu0 0
    %1663 = vmatpush2.bf16.msra.mxu0 0
    %1664 = vmatprep.subr.bf16.mxu0 0
    %1665 = vmatpush2.bf16.msra.mxu0 0
    %1666 = vmatprep.subr.bf16.mxu0 0
    %1667 = vmatpush2.bf16.msra.mxu0 0
    %1668 = vmatprep.subr.bf16.mxu0 0
    %1669 = vmatpush2.bf16.msra.mxu0 0
    %1670 = vmatprep.subr.bf16.mxu0 0
    %1671 = vmatpush2.bf16.msra.mxu0 0
    %1672 = vmatprep.subr.bf16.mxu0 0
    %1673 = vmatpush2.bf16.msra.mxu0 0
    %1674 = vmatprep.subr.bf16.mxu0 0
    %1675 = vmatpush2.bf16.msra.mxu0 0
    %1676 = vmatprep.mubr.bf16.mxu0 0
    %1677 = vmatmul.mubr.bf16.gmra.mxu0 %v1546
    %v1678 = vpop.f32.mrf.mxu0
    %v1679 = vadd.f32 %v1126, %v1678
    %v1680 = vpop.f32.mrf.mxu0
    %v1681 = vpop.f32.mrf.mxu0
    %v1682 = vadd.f32 %v1129, %v1681
    %v1683 = vpop.f32.mrf.mxu0
    %1684 = vmatprep.mubr.bf16.mxu0 0
    %1685 = vmatmul.mubr.bf16.gmra.mxu0 %v1549
    %v1686 = vpop.f32.mrf.mxu0
    %v1687 = vadd.f32 %v1134, %v1686
    %v1688 = vpop.f32.mrf.mxu0
    %v1689 = vpop.f32.mrf.mxu0
    %v1690 = vadd.f32 %v1137, %v1689
    %v1691 = vpop.f32.mrf.mxu0
    %1692 = vmatprep.mubr.bf16.mxu0 0
    %1693 = vmatmul.mubr.bf16.gmra.mxu0 %v1552
    %v1694 = vpop.f32.mrf.mxu0
    %v1695 = vadd.f32 %v1142, %v1694
    %v1696 = vpop.f32.mrf.mxu0
    %v1697 = vpop.f32.mrf.mxu0
    %v1698 = vadd.f32 %v1145, %v1697
    %v1699 = vpop.f32.mrf.mxu0
    %1700 = vmatprep.mubr.bf16.mxu0 0
    %1701 = vmatmul.mubr.bf16.gmra.mxu0 %v1555
    %v1702 = vpop.f32.mrf.mxu0
    %v1703 = vadd.f32 %v1150, %v1702
    %v1704 = vpop.f32.mrf.mxu0
    %v1705 = vpop.f32.mrf.mxu0
    %v1706 = vadd.f32 %v1153, %v1705
    %v1707 = vpop.f32.mrf.mxu0
    %1708 = vmatprep.mubr.bf16.mxu0 0
    %1709 = vmatmul.mubr.bf16.gmra.mxu0 %v1558
    %v1710 = vpop.f32.mrf.mxu0
    %v1711 = vadd.f32 %v1158, %v1710
    %v1712 = vpop.f32.mrf.mxu0
    %v1713 = vpop.f32.mrf.mxu0
    %v1714 = vadd.f32 %v1161, %v1713
    %v1715 = vpop.f32.mrf.mxu0
    %1716 = vmatprep.mubr.bf16.mxu0 0
    %1717 = vmatmul.mubr.bf16.gmra.mxu0 %v1561
    %v1718 = vpop.f32.mrf.mxu0
    %v1719 = vadd.f32 %v1166, %v1718
    %v1720 = vpop.f32.mrf.mxu0
    %v1721 = vpop.f32.mrf.mxu0
    %v1722 = vadd.f32 %v1169, %v1721
    %v1723 = vpop.f32.mrf.mxu0
    %1724 = vmatprep.mubr.bf16.mxu0 0
    %1725 = vmatmul.mubr.bf16.gmra.mxu0 %v1564
    %v1726 = vpop.f32.mrf.mxu0
    %v1727 = vadd.f32 %v1174, %v1726
    %v1728 = vpop.f32.mrf.mxu0
    %v1729 = vpop.f32.mrf.mxu0
    %v1730 = vadd.f32 %v1177, %v1729
    %v1731 = vpop.f32.mrf.mxu0
    %1732 = vmatprep.mubr.bf16.mxu0 0
    %1733 = vmatmul.mubr.bf16.gmra.mxu0 %v1567
    %v1734 = vpop.f32.mrf.mxu0
    %v1735 = vadd.f32 %v1182, %v1734
    %v1736 = vpop.f32.mrf.mxu0
    %v1737 = vpop.f32.mrf.mxu0
    %v1738 = vadd.f32 %v1185, %v1737
    %v1739 = vpop.f32.mrf.mxu0
    %1740 = vmatprep.mubr.bf16.mxu0 0
    %1741 = vmatmul.mubr.bf16.gmra.mxu0 %v1570
    %v1742 = vpop.f32.mrf.mxu0
    %v1743 = vadd.f32 %v1190, %v1742
    %v1744 = vpop.f32.mrf.mxu0
    %v1745 = vpop.f32.mrf.mxu0
    %v1746 = vadd.f32 %v1193, %v1745
    %v1747 = vpop.f32.mrf.mxu0
    %1748 = vmatprep.mubr.bf16.mxu0 0
    %1749 = vmatmul.mubr.bf16.gmra.mxu0 %v1573
    %v1750 = vpop.f32.mrf.mxu0
    %v1751 = vadd.f32 %v1198, %v1750
    %v1752 = vpop.f32.mrf.mxu0
    %v1753 = vpop.f32.mrf.mxu0
    %v1754 = vadd.f32 %v1201, %v1753
    %v1755 = vpop.f32.mrf.mxu0
    %1756 = vmatprep.mubr.bf16.mxu0 0
    %1757 = vmatmul.mubr.bf16.gmra.mxu0 %v1576
    %v1758 = vpop.f32.mrf.mxu0
    %v1759 = vadd.f32 %v1206, %v1758
    %v1760 = vpop.f32.mrf.mxu0
    %v1761 = vpop.f32.mrf.mxu0
    %v1762 = vadd.f32 %v1209, %v1761
    %v1763 = vpop.f32.mrf.mxu0
    %1764 = vmatprep.mubr.bf16.mxu0 0
    %1765 = vmatmul.mubr.bf16.gmra.mxu0 %v1579
    %v1766 = vpop.f32.mrf.mxu0
    %v1767 = vadd.f32 %v1214, %v1766
    %v1768 = vpop.f32.mrf.mxu0
    %v1769 = vpop.f32.mrf.mxu0
    %v1770 = vadd.f32 %v1217, %v1769
    %v1771 = vpop.f32.mrf.mxu0
    %1772 = vmatprep.mubr.bf16.mxu0 0
    %1773 = vmatmul.mubr.bf16.gmra.mxu0 %v1582
    %v1774 = vpop.f32.mrf.mxu0
    %v1775 = vadd.f32 %v1222, %v1774
    %v1776 = vpop.f32.mrf.mxu0
    %v1777 = vpop.f32.mrf.mxu0
    %v1778 = vadd.f32 %v1225, %v1777
    %v1779 = vpop.f32.mrf.mxu0
    %1780 = vmatprep.mubr.bf16.mxu0 0
    %1781 = vmatmul.mubr.bf16.gmra.mxu0 %v1585
    %v1782 = vpop.f32.mrf.mxu0
    %v1783 = vadd.f32 %v1230, %v1782
    %v1784 = vpop.f32.mrf.mxu0
    %v1785 = vpop.f32.mrf.mxu0
    %v1786 = vadd.f32 %v1233, %v1785
    %v1787 = vpop.f32.mrf.mxu0
    %1788 = vmatprep.mubr.bf16.mxu0 0
    %1789 = vmatmul.mubr.bf16.gmra.mxu0 %v1588
    %v1790 = vpop.f32.mrf.mxu0
    %v1791 = vadd.f32 %v1238, %v1790
    %v1792 = vpop.f32.mrf.mxu0
    %v1793 = vpop.f32.mrf.mxu0
    %v1794 = vadd.f32 %v1241, %v1793
    %v1795 = vpop.f32.mrf.mxu0
    %1796 = vmatprep.mubr.bf16.mxu0 0
    %1797 = vmatmul.mubr.bf16.gmra.mxu0 %v1591
    %v1798 = vpop.f32.mrf.mxu0
    %v1799 = vadd.f32 %v1246, %v1798
    %v1800 = vpop.f32.mrf.mxu0
    %v1801 = vpop.f32.mrf.mxu0
    %v1802 = vadd.f32 %v1249, %v1801
    %v1803 = vpop.f32.mrf.mxu0
    %1804 = vmatprep.mubr.bf16.mxu0 0
    %1805 = vmatmul.mubr.bf16.gmra.mxu0 %v1594
    %v1806 = vpop.f32.mrf.mxu0
    %v1807 = vadd.f32 %v1254, %v1806
    %v1808 = vpop.f32.mrf.mxu0
    %v1809 = vpop.f32.mrf.mxu0
    %v1810 = vadd.f32 %v1257, %v1809
    %v1811 = vpop.f32.mrf.mxu0
    %1812 = vmatprep.mubr.bf16.mxu0 0
    %1813 = vmatmul.mubr.bf16.gmra.mxu0 %v1597
    %v1814 = vpop.f32.mrf.mxu0
    %v1815 = vadd.f32 %v1262, %v1814
    %v1816 = vpop.f32.mrf.mxu0
    %v1817 = vpop.f32.mrf.mxu0
    %v1818 = vadd.f32 %v1265, %v1817
    %v1819 = vpop.f32.mrf.mxu0
    %1820 = vmatprep.mubr.bf16.mxu0 0
    %1821 = vmatmul.mubr.bf16.gmra.mxu0 %v1600
    %v1822 = vpop.f32.mrf.mxu0
    %v1823 = vadd.f32 %v1270, %v1822
    %v1824 = vpop.f32.mrf.mxu0
    %v1825 = vpop.f32.mrf.mxu0
    %v1826 = vadd.f32 %v1273, %v1825
    %v1827 = vpop.f32.mrf.mxu0
    %1828 = vmatprep.mubr.bf16.mxu0 0
    %1829 = vmatmul.mubr.bf16.gmra.mxu0 %v1603
    %v1830 = vpop.f32.mrf.mxu0
    %v1831 = vadd.f32 %v1278, %v1830
    %v1832 = vpop.f32.mrf.mxu0
    %v1833 = vpop.f32.mrf.mxu0
    %v1834 = vadd.f32 %v1281, %v1833
    %v1835 = vpop.f32.mrf.mxu0
    %1836 = vmatprep.mubr.bf16.mxu0 0
    %1837 = vmatmul.mubr.bf16.gmra.mxu0 %v1606
    %v1838 = vpop.f32.mrf.mxu0
    %v1839 = vadd.f32 %v1286, %v1838
    %v1840 = vpop.f32.mrf.mxu0
    %v1841 = vpop.f32.mrf.mxu0
    %v1842 = vadd.f32 %v1289, %v1841
    %v1843 = vpop.f32.mrf.mxu0
    %1844 = vmatprep.mubr.bf16.mxu0 0
    %1845 = vmatmul.mubr.bf16.gmra.mxu0 %v1609
    %v1846 = vpop.f32.mrf.mxu0
    %v1847 = vadd.f32 %v1294, %v1846
    %v1848 = vpop.f32.mrf.mxu0
    %v1849 = vpop.f32.mrf.mxu0
    %v1850 = vadd.f32 %v1297, %v1849
    %v1851 = vpop.f32.mrf.mxu0
    %1852 = vmatprep.mubr.bf16.mxu0 0
    %1853 = vmatmul.mubr.bf16.gmra.mxu0 %v1612
    %v1854 = vpop.f32.mrf.mxu0
    %v1855 = vadd.f32 %v1302, %v1854
    %v1856 = vpop.f32.mrf.mxu0
    %v1857 = vpop.f32.mrf.mxu0
    %v1858 = vadd.f32 %v1305, %v1857
    %v1859 = vpop.f32.mrf.mxu0
    %1860 = vmatprep.mubr.bf16.mxu0 0
    %1861 = vmatmul.mubr.bf16.gmra.mxu0 %v1615
    %v1862 = vpop.f32.mrf.mxu0
    %v1863 = vadd.f32 %v1310, %v1862
    %v1864 = vpop.f32.mrf.mxu0
    %v1865 = vpop.f32.mrf.mxu0
    %v1866 = vadd.f32 %v1313, %v1865
    %v1867 = vpop.f32.mrf.mxu0
    %1868 = vmatprep.mubr.bf16.mxu0 0
    %1869 = vmatmul.mubr.bf16.gmra.mxu0 %v1618
    %v1870 = vpop.f32.mrf.mxu0
    %v1871 = vadd.f32 %v1318, %v1870
    %v1872 = vpop.f32.mrf.mxu0
    %v1873 = vpop.f32.mrf.mxu0
    %v1874 = vadd.f32 %v1321, %v1873
    %v1875 = vpop.f32.mrf.mxu0
    %1876 = vmatprep.mubr.bf16.mxu0 0
    %1877 = vmatmul.mubr.bf16.gmra.mxu0 %v1621
    %v1878 = vpop.f32.mrf.mxu0
    %v1879 = vadd.f32 %v1326, %v1878
    %v1880 = vpop.f32.mrf.mxu0
    %v1881 = vpop.f32.mrf.mxu0
    %v1882 = vadd.f32 %v1329, %v1881
    %v1883 = vpop.f32.mrf.mxu0
    %1884 = vmatprep.mubr.bf16.mxu0 0
    %1885 = vmatmul.mubr.bf16.gmra.mxu0 %v1624
    %v1886 = vpop.f32.mrf.mxu0
    %v1887 = vadd.f32 %v1334, %v1886
    %v1888 = vpop.f32.mrf.mxu0
    %v1889 = vpop.f32.mrf.mxu0
    %v1890 = vadd.f32 %v1337, %v1889
    %v1891 = vpop.f32.mrf.mxu0
    %1892 = vmatprep.mubr.bf16.mxu0 0
    %1893 = vmatmul.mubr.bf16.gmra.mxu0 %v1627
    %v1894 = vpop.f32.mrf.mxu0
    %v1895 = vadd.f32 %v1342, %v1894
    %v1896 = vpop.f32.mrf.mxu0
    %v1897 = vpop.f32.mrf.mxu0
    %v1898 = vadd.f32 %v1345, %v1897
    %v1899 = vpop.f32.mrf.mxu0
    %1900 = vmatprep.mubr.bf16.mxu0 0
    %1901 = vmatmul.mubr.bf16.gmra.mxu0 %v1630
    %v1902 = vpop.f32.mrf.mxu0
    %v1903 = vadd.f32 %v1350, %v1902
    %v1904 = vpop.f32.mrf.mxu0
    %v1905 = vpop.f32.mrf.mxu0
    %v1906 = vadd.f32 %v1353, %v1905
    %v1907 = vpop.f32.mrf.mxu0
    %1908 = vmatprep.mubr.bf16.mxu0 0
    %1909 = vmatmul.mubr.bf16.gmra.mxu0 %v1633
    %v1910 = vpop.f32.mrf.mxu0
    %v1911 = vadd.f32 %v1358, %v1910
    %v1912 = vpop.f32.mrf.mxu0
    %v1913 = vpop.f32.mrf.mxu0
    %v1914 = vadd.f32 %v1361, %v1913
    %v1915 = vpop.f32.mrf.mxu0
    %1916 = vmatprep.mubr.bf16.mxu0 0
    %1917 = vmatmul.mubr.bf16.gmra.mxu0 %v1636
    %v1918 = vpop.f32.mrf.mxu0
    %v1919 = vadd.f32 %v1366, %v1918
    %v1920 = vpop.f32.mrf.mxu0
    %v1921 = vpop.f32.mrf.mxu0
    %v1922 = vadd.f32 %v1369, %v1921
    %v1923 = vpop.f32.mrf.mxu0
    %1924 = vmatprep.mubr.bf16.mxu0 0
    %1925 = vmatmul.mubr.bf16.gmra.mxu0 %v1639
    %v1926 = vpop.f32.mrf.mxu0
    %v1927 = vadd.f32 %v1374, %v1926
    %v1928 = vpop.f32.mrf.mxu0
    %v1929 = vpop.f32.mrf.mxu0
    %v1930 = vadd.f32 %v1377, %v1929
    %v1931 = vpop.f32.mrf.mxu0
    %1932 = vdwg.mxu0
    %v1933 = vld [vmem:[%s0] sm:$0xe]
    %v1934 = vld [vmem:[%s0 + $0xc] sm:$0xe]
    %v1935 = vld [vmem:[%s0 + $0x18] sm:$0xe]
    %v1936 = vld [vmem:[%s0 + $0x24] sm:$0xe]
    %v1937 = vld [vmem:[%s0 + $0x30] sm:$0xe]
    %v1938 = vld [vmem:[%s0 + $0x3c] sm:$0xe]
    %v1939 = vld [vmem:[%s0 + $0x48] sm:$0xe]
    %v1940 = vld [vmem:[%s0 + $0x54] sm:$0xe]
    %v1941 = vld [vmem:[%s0 + $0x60] sm:$0xe]
    %v1942 = vld [vmem:[%s0 + $0x6c] sm:$0xe]
    %v1943 = vld [vmem:[%s0 + $0x78] sm:$0xe]
    %v1944 = vld [vmem:[%s0 + $0x84] sm:$0xe]
    %v1945 = vld [vmem:[%s0 + $0x90] sm:$0xe]
    %v1946 = vld [vmem:[%s0 + $0x9c] sm:$0xe]
    %v1947 = vld [vmem:[%s0 + $0xa8] sm:$0xe]
    %v1948 = vld [vmem:[%s0 + $0xb4] sm:$0xe]
    %v1949 = vld [vmem:[%s0 + $0xc0] sm:$0xe]
    %v1950 = vld [vmem:[%s0 + $0xcc] sm:$0xe]
    %v1951 = vld [vmem:[%s0 + $0xd8] sm:$0xe]
    %v1952 = vld [vmem:[%s0 + $0xe4] sm:$0xe]
    %v1953 = vld [vmem:[%s0 + $0xf0] sm:$0xe]
    %v1954 = vld [vmem:[%s0 + $0xfc] sm:$0xe]
    %v1955 = vld [vmem:[%s0 + $0x108] sm:$0xe]
    %v1956 = vld [vmem:[%s0 + $0x114] sm:$0xe]
    %v1957 = vld [vmem:[%s0 + $0x120] sm:$0xe]
    %v1958 = vld [vmem:[%s0 + $0x12c] sm:$0xe]
    %v1959 = vld [vmem:[%s0 + $0x138] sm:$0xe]
    %v1960 = vld [vmem:[%s0 + $0x144] sm:$0xe]
    %v1961 = vld [vmem:[%s0 + $0x150] sm:$0xe]
    %v1962 = vld [vmem:[%s0 + $0x15c] sm:$0xe]
    %v1963 = vld [vmem:[%s0 + $0x168] sm:$0xe]
    %v1964 = vld [vmem:[%s0 + $0x174] sm:$0xe]
    %vm2029 = vcmask 1042432
    %vm2030 = vcmask 1046532
    %vm2031 = vmor %vm2029, %vm2030
    %v2032 = vrot.slane %v1933, 5
    %v2033 = vrot.slane %v2032, 4
    %v2034 = vrot.slane %v18, 5
    %v2035 = vsel %vm2031, %v2033, %v2034
    %v2036 = vrot.slane %v2034, 4
    %v2037 = vrot.slane %v83, 5
    %v2038 = vsel %vm2031, %v2036, %v2037
    %v2039 = vrot.slane %v1934, 5
    %v2040 = vrot.slane %v2039, 4
    %v2041 = vrot.slane %v20, 5
    %v2042 = vsel %vm2031, %v2040, %v2041
    %v2043 = vrot.slane %v2041, 4
    %v2044 = vrot.slane %v84, 5
    %v2045 = vsel %vm2031, %v2043, %v2044
    %v2046 = vrot.slane %v1935, 5
    %v2047 = vrot.slane %v2046, 4
    %v2048 = vrot.slane %v22, 5
    %v2049 = vsel %vm2031, %v2047, %v2048
    %v2050 = vrot.slane %v2048, 4
    %v2051 = vrot.slane %v85, 5
    %v2052 = vsel %vm2031, %v2050, %v2051
    %v2053 = vrot.slane %v1936, 5
    %v2054 = vrot.slane %v2053, 4
    %v2055 = vrot.slane %v24, 5
    %v2056 = vsel %vm2031, %v2054, %v2055
    %v2057 = vrot.slane %v2055, 4
    %v2058 = vrot.slane %v86, 5
    %v2059 = vsel %vm2031, %v2057, %v2058
    %v2060 = vrot.slane %v1937, 5
    %v2061 = vrot.slane %v2060, 4
    %v2062 = vrot.slane %v26, 5
    %v2063 = vsel %vm2031, %v2061, %v2062
    %v2064 = vrot.slane %v2062, 4
    %v2065 = vrot.slane %v87, 5
    %v2066 = vsel %vm2031, %v2064, %v2065
    %v2067 = vrot.slane %v1938, 5
    %v2068 = vrot.slane %v2067, 4
    %v2069 = vrot.slane %v28, 5
    %v2070 = vsel %vm2031, %v2068, %v2069
    %v2071 = vrot.slane %v2069, 4
    %v2072 = vrot.slane %v88, 5
    %v2073 = vsel %vm2031, %v2071, %v2072
    %v2074 = vrot.slane %v1939, 5
    %v2075 = vrot.slane %v2074, 4
    %v2076 = vrot.slane %v30, 5
    %v2077 = vsel %vm2031, %v2075, %v2076
    %v2078 = vrot.slane %v2076, 4
    %v2079 = vrot.slane %v89, 5
    %v2080 = vsel %vm2031, %v2078, %v2079
    %v2081 = vrot.slane %v1940, 5
    %v2082 = vrot.slane %v2081, 4
    %v2083 = vrot.slane %v32, 5
    %v2084 = vsel %vm2031, %v2082, %v2083
    %v2085 = vrot.slane %v2083, 4
    %v2086 = vrot.slane %v90, 5
    %v2087 = vsel %vm2031, %v2085, %v2086
    %v2088 = vrot.slane %v1941, 5
    %v2089 = vrot.slane %v2088, 4
    %v2090 = vrot.slane %v34, 5
    %v2091 = vsel %vm2031, %v2089, %v2090
    %v2092 = vrot.slane %v2090, 4
    %v2093 = vrot.slane %v91, 5
    %v2094 = vsel %vm2031, %v2092, %v2093
    %v2095 = vrot.slane %v1942, 5
    %v2096 = vrot.slane %v2095, 4
    %v2097 = vrot.slane %v36, 5
    %v2098 = vsel %vm2031, %v2096, %v2097
    %v2099 = vrot.slane %v2097, 4
    %v2100 = vrot.slane %v92, 5
    %v2101 = vsel %vm2031, %v2099, %v2100
    %v2102 = vrot.slane %v1943, 5
    %v2103 = vrot.slane %v2102, 4
    %v2104 = vrot.slane %v38, 5
    %v2105 = vsel %vm2031, %v2103, %v2104
    %v2106 = vrot.slane %v2104, 4
    %v2107 = vrot.slane %v93, 5
    %v2108 = vsel %vm2031, %v2106, %v2107
    %v2109 = vrot.slane %v1944, 5
    %v2110 = vrot.slane %v2109, 4
    %v2111 = vrot.slane %v40, 5
    %v2112 = vsel %vm2031, %v2110, %v2111
    %v2113 = vrot.slane %v2111, 4
    %v2114 = vrot.slane %v94, 5
    %v2115 = vsel %vm2031, %v2113, %v2114
    %v2116 = vrot.slane %v1945, 5
    %v2117 = vrot.slane %v2116, 4
    %v2118 = vrot.slane %v42, 5
    %v2119 = vsel %vm2031, %v2117, %v2118
    %v2120 = vrot.slane %v2118, 4
    %v2121 = vrot.slane %v95, 5
    %v2122 = vsel %vm2031, %v2120, %v2121
    %v2123 = vrot.slane %v1946, 5
    %v2124 = vrot.slane %v2123, 4
    %v2125 = vrot.slane %v44, 5
    %v2126 = vsel %vm2031, %v2124, %v2125
    %v2127 = vrot.slane %v2125, 4
    %v2128 = vrot.slane %v96, 5
    %v2129 = vsel %vm2031, %v2127, %v2128
    %v2130 = vrot.slane %v1947, 5
    %v2131 = vrot.slane %v2130, 4
    %v2132 = vrot.slane %v46, 5
    %v2133 = vsel %vm2031, %v2131, %v2132
    %v2134 = vrot.slane %v2132, 4
    %v2135 = vrot.slane %v97, 5
    %v2136 = vsel %vm2031, %v2134, %v2135
    %v2137 = vrot.slane %v1948, 5
    %v2138 = vrot.slane %v2137, 4
    %v2139 = vrot.slane %v48, 5
    %v2140 = vsel %vm2031, %v2138, %v2139
    %v2141 = vrot.slane %v2139, 4
    %v2142 = vrot.slane %v98, 5
    %v2143 = vsel %vm2031, %v2141, %v2142
    %v2144 = vrot.slane %v1949, 5
    %v2145 = vrot.slane %v2144, 4
    %v2146 = vrot.slane %v50, 5
    %v2147 = vsel %vm2031, %v2145, %v2146
    %v2148 = vrot.slane %v2146, 4
    %v2149 = vrot.slane %v99, 5
    %v2150 = vsel %vm2031, %v2148, %v2149
    %v2151 = vrot.slane %v1950, 5
    %v2152 = vrot.slane %v2151, 4
    %v2153 = vrot.slane %v52, 5
    %v2154 = vsel %vm2031, %v2152, %v2153
    %v2155 = vrot.slane %v2153, 4
    %v2156 = vrot.slane %v100, 5
    %v2157 = vsel %vm2031, %v2155, %v2156
    %v2158 = vrot.slane %v1951, 5
    %v2159 = vrot.slane %v2158, 4
    %v2160 = vrot.slane %v54, 5
    %v2161 = vsel %vm2031, %v2159, %v2160
    %v2162 = vrot.slane %v2160, 4
    %v2163 = vrot.slane %v101, 5
    %v2164 = vsel %vm2031, %v2162, %v2163
    %v2165 = vrot.slane %v1952, 5
    %v2166 = vrot.slane %v2165, 4
    %v2167 = vrot.slane %v56, 5
    %v2168 = vsel %vm2031, %v2166, %v2167
    %v2169 = vrot.slane %v2167, 4
    %v2170 = vrot.slane %v102, 5
    %v2171 = vsel %vm2031, %v2169, %v2170
    %v2172 = vrot.slane %v1953, 5
    %v2173 = vrot.slane %v2172, 4
    %v2174 = vrot.slane %v58, 5
    %v2175 = vsel %vm2031, %v2173, %v2174
    %v2176 = vrot.slane %v2174, 4
    %v2177 = vrot.slane %v103, 5
    %v2178 = vsel %vm2031, %v2176, %v2177
    %v2179 = vrot.slane %v1954, 5
    %v2180 = vrot.slane %v2179, 4
    %v2181 = vrot.slane %v60, 5
    %v2182 = vsel %vm2031, %v2180, %v2181
    %v2183 = vrot.slane %v2181, 4
    %v2184 = vrot.slane %v104, 5
    %v2185 = vsel %vm2031, %v2183, %v2184
    %v2186 = vrot.slane %v1955, 5
    %v2187 = vrot.slane %v2186, 4
    %v2188 = vrot.slane %v62, 5
    %v2189 = vsel %vm2031, %v2187, %v2188
    %v2190 = vrot.slane %v2188, 4
    %v2191 = vrot.slane %v105, 5
    %v2192 = vsel %vm2031, %v2190, %v2191
    %v2193 = vrot.slane %v1956, 5
    %v2194 = vrot.slane %v2193, 4
    %v2195 = vrot.slane %v64, 5
    %v2196 = vsel %vm2031, %v2194, %v2195
    %v2197 = vrot.slane %v2195, 4
    %v2198 = vrot.slane %v106, 5
    %v2199 = vsel %vm2031, %v2197, %v2198
    %v2200 = vrot.slane %v1957, 5
    %v2201 = vrot.slane %v2200, 4
    %v2202 = vrot.slane %v66, 5
    %v2203 = vsel %vm2031, %v2201, %v2202
    %v2204 = vrot.slane %v2202, 4
    %v2205 = vrot.slane %v107, 5
    %v2206 = vsel %vm2031, %v2204, %v2205
    %v2207 = vrot.slane %v1958, 5
    %v2208 = vrot.slane %v2207, 4
    %v2209 = vrot.slane %v68, 5
    %v2210 = vsel %vm2031, %v2208, %v2209
    %v2211 = vrot.slane %v2209, 4
    %v2212 = vrot.slane %v108, 5
    %v2213 = vsel %vm2031, %v2211, %v2212
    %v2214 = vrot.slane %v1959, 5
    %v2215 = vrot.slane %v2214, 4
    %v2216 = vrot.slane %v70, 5
    %v2217 = vsel %vm2031, %v2215, %v2216
    %v2218 = vrot.slane %v2216, 4
    %v2219 = vrot.slane %v109, 5
    %v2220 = vsel %vm2031, %v2218, %v2219
    %v2221 = vrot.slane %v1960, 5
    %v2222 = vrot.slane %v2221, 4
    %v2223 = vrot.slane %v72, 5
    %v2224 = vsel %vm2031, %v2222, %v2223
    %v2225 = vrot.slane %v2223, 4
    %v2226 = vrot.slane %v110, 5
    %v2227 = vsel %vm2031, %v2225, %v2226
    %v2228 = vrot.slane %v1961, 5
    %v2229 = vrot.slane %v2228, 4
    %v2230 = vrot.slane %v74, 5
    %v2231 = vsel %vm2031, %v2229, %v2230
    %v2232 = vrot.slane %v2230, 4
    %v2233 = vrot.slane %v111, 5
    %v2234 = vsel %vm2031, %v2232, %v2233
    %v2235 = vrot.slane %v1962, 5
    %v2236 = vrot.slane %v2235, 4
    %v2237 = vrot.slane %v76, 5
    %v2238 = vsel %vm2031, %v2236, %v2237
    %v2239 = vrot.slane %v2237, 4
    %v2240 = vrot.slane %v112, 5
    %v2241 = vsel %vm2031, %v2239, %v2240
    %v2242 = vrot.slane %v1963, 5
    %v2243 = vrot.slane %v2242, 4
    %v2244 = vrot.slane %v78, 5
    %v2245 = vsel %vm2031, %v2243, %v2244
    %v2246 = vrot.slane %v2244, 4
    %v2247 = vrot.slane %v113, 5
    %v2248 = vsel %vm2031, %v2246, %v2247
    %v2249 = vrot.slane %v1964, 5
    %v2250 = vrot.slane %v2249, 4
    %v2251 = vrot.slane %v80, 5
    %v2252 = vsel %vm2031, %v2250, %v2251
    %v2253 = vrot.slane %v2251, 4
    %v2254 = vrot.slane %v114, 5
    %v2255 = vsel %vm2031, %v2253, %v2254
    %s2256 = scalar_lea.vmem %s1, 16
    %v2257 = vld [vmem:[%s2256] sm:$0xf]
    %v2258 = vld [vmem:[%s2256 + $0x4] sm:$0x3]
    %v2259 = vunpack.c.l.b16 %v2035
    %v2260 = vunpack.c.l.b16 %v2038
    %v2261 = vunpack.c.l.b16 %v2042
    %v2262 = vunpack.c.l.b16 %v2045
    %v2263 = vunpack.c.l.b16 %v2049
    %v2264 = vunpack.c.l.b16 %v2052
    %v2265 = vunpack.c.l.b16 %v2056
    %v2266 = vunpack.c.l.b16 %v2059
    %v2267 = vunpack.c.l.b16 %v2063
    %v2268 = vunpack.c.l.b16 %v2066
    %v2269 = vunpack.c.l.b16 %v2070
    %v2270 = vunpack.c.l.b16 %v2073
    %v2271 = vunpack.c.l.b16 %v2077
    %v2272 = vunpack.c.l.b16 %v2080
    %v2273 = vunpack.c.l.b16 %v2084
    %v2274 = vunpack.c.l.b16 %v2087
    %v2275 = vunpack.c.l.b16 %v2091
    %v2276 = vunpack.c.l.b16 %v2094
    %v2277 = vunpack.c.l.b16 %v2098
    %v2278 = vunpack.c.l.b16 %v2101
    %v2279 = vunpack.c.l.b16 %v2105
    %v2280 = vunpack.c.l.b16 %v2108
    %v2281 = vunpack.c.l.b16 %v2112
    %v2282 = vunpack.c.l.b16 %v2115
    %v2283 = vunpack.c.l.b16 %v2119
    %v2284 = vunpack.c.l.b16 %v2122
    %v2285 = vunpack.c.l.b16 %v2126
    %v2286 = vunpack.c.l.b16 %v2129
    %v2287 = vunpack.c.l.b16 %v2133
    %v2288 = vunpack.c.l.b16 %v2136
    %v2289 = vunpack.c.l.b16 %v2140
    %v2290 = vunpack.c.l.b16 %v2143
    %v2291 = vunpack.c.l.b16 %v2147
    %v2292 = vunpack.c.l.b16 %v2150
    %v2293 = vunpack.c.l.b16 %v2154
    %v2294 = vunpack.c.l.b16 %v2157
    %v2295 = vunpack.c.l.b16 %v2161
    %v2296 = vunpack.c.l.b16 %v2164
    %v2297 = vunpack.c.l.b16 %v2168
    %v2298 = vunpack.c.l.b16 %v2171
    %v2299 = vunpack.c.l.b16 %v2175
    %v2300 = vunpack.c.l.b16 %v2178
    %v2301 = vunpack.c.l.b16 %v2182
    %v2302 = vunpack.c.l.b16 %v2185
    %v2303 = vunpack.c.l.b16 %v2189
    %v2304 = vunpack.c.l.b16 %v2192
    %v2305 = vunpack.c.l.b16 %v2196
    %v2306 = vunpack.c.l.b16 %v2199
    %v2307 = vunpack.c.l.b16 %v2203
    %v2308 = vunpack.c.l.b16 %v2206
    %v2309 = vunpack.c.l.b16 %v2210
    %v2310 = vunpack.c.l.b16 %v2213
    %v2311 = vunpack.c.l.b16 %v2217
    %v2312 = vunpack.c.l.b16 %v2220
    %v2313 = vunpack.c.l.b16 %v2224
    %v2314 = vunpack.c.l.b16 %v2227
    %v2315 = vunpack.c.l.b16 %v2231
    %v2316 = vunpack.c.l.b16 %v2234
    %v2317 = vunpack.c.l.b16 %v2238
    %v2318 = vunpack.c.l.b16 %v2241
    %v2319 = vunpack.c.l.b16 %v2245
    %v2320 = vunpack.c.l.b16 %v2248
    %v2321 = vunpack.c.l.b16 %v2252
    %v2322 = vunpack.c.l.b16 %v2255
    %v2323 = vpack.c.b16 %v2260, %v2259
    %v2324 = vpack.c.b16 %v2262, %v2261
    %v2325 = vpack.c.b16 %v2264, %v2263
    %v2326 = vpack.c.b16 %v2266, %v2265
    %v2327 = vpack.c.b16 %v2268, %v2267
    %v2328 = vpack.c.b16 %v2270, %v2269
    %v2329 = vpack.c.b16 %v2272, %v2271
    %v2330 = vpack.c.b16 %v2274, %v2273
    %v2331 = vpack.c.b16 %v2276, %v2275
    %v2332 = vpack.c.b16 %v2278, %v2277
    %v2333 = vpack.c.b16 %v2280, %v2279
    %v2334 = vpack.c.b16 %v2282, %v2281
    %v2335 = vpack.c.b16 %v2284, %v2283
    %v2336 = vpack.c.b16 %v2286, %v2285
    %v2337 = vpack.c.b16 %v2288, %v2287
    %v2338 = vpack.c.b16 %v2290, %v2289
    %v2339 = vpack.c.b16 %v2292, %v2291
    %v2340 = vpack.c.b16 %v2294, %v2293
    %v2341 = vpack.c.b16 %v2296, %v2295
    %v2342 = vpack.c.b16 %v2298, %v2297
    %v2343 = vpack.c.b16 %v2300, %v2299
    %v2344 = vpack.c.b16 %v2302, %v2301
    %v2345 = vpack.c.b16 %v2304, %v2303
    %v2346 = vpack.c.b16 %v2306, %v2305
    %v2347 = vpack.c.b16 %v2308, %v2307
    %v2348 = vpack.c.b16 %v2310, %v2309
    %v2349 = vpack.c.b16 %v2312, %v2311
    %v2350 = vpack.c.b16 %v2314, %v2313
    %v2351 = vpack.c.b16 %v2316, %v2315
    %v2352 = vpack.c.b16 %v2318, %v2317
    %v2353 = vpack.c.b16 %v2320, %v2319
    %v2354 = vpack.c.b16 %v2322, %v2321
    %v2357 = vunpack.c.l.b16 %v2257
    %v2358 = vunpack.c.l.b16 %v2258
    %v2359 = vpack.c.b16 %v2358, %v2357
    %v2361 = vsel %vm990, %v2323, 0
    %v2364 = vsel %vm990, %v2324, 0
    %v2367 = vsel %vm990, %v2325, 0
    %v2370 = vsel %vm990, %v2326, 0
    %v2373 = vsel %vm990, %v2327, 0
    %v2376 = vsel %vm990, %v2328, 0
    %v2379 = vsel %vm990, %v2329, 0
    %v2382 = vsel %vm990, %v2330, 0
    %v2385 = vsel %vm990, %v2331, 0
    %v2388 = vsel %vm990, %v2332, 0
    %v2391 = vsel %vm990, %v2333, 0
    %v2394 = vsel %vm990, %v2334, 0
    %v2397 = vsel %vm990, %v2335, 0
    %v2400 = vsel %vm990, %v2336, 0
    %v2403 = vsel %vm990, %v2337, 0
    %v2406 = vsel %vm990, %v2338, 0
    %v2409 = vsel %vm990, %v2339, 0
    %v2412 = vsel %vm990, %v2340, 0
    %v2415 = vsel %vm990, %v2341, 0
    %v2418 = vsel %vm990, %v2342, 0
    %v2421 = vsel %vm990, %v2343, 0
    %v2424 = vsel %vm990, %v2344, 0
    %v2427 = vsel %vm990, %v2345, 0
    %v2430 = vsel %vm990, %v2346, 0
    %v2433 = vsel %vm990, %v2347, 0
    %v2436 = vsel %vm990, %v2348, 0
    %v2439 = vsel %vm990, %v2349, 0
    %v2442 = vsel %vm990, %v2350, 0
    %v2445 = vsel %vm990, %v2351, 0
    %v2448 = vsel %vm990, %v2352, 0
    %v2451 = vsel %vm990, %v2353, 0
    %v2454 = vsel %vm990, %v2354, 0
    %v2457 = vsel %vm1087, %v2359, 0
    %2459 = vmatprep.subr.bf16.mxu0 0
    %2460 = vmatpush1.bf16.msra.mxu0 0
    %2461 = vmatprep.subr.bf16.mxu0 0
    %2462 = vmatpush1.bf16.msra.mxu0 0
    %2463 = vmatprep.subr.bf16.mxu0 0
    %2464 = vmatpush1.bf16.msra.mxu0 0
    %2465 = vmatprep.subr.bf16.mxu0 0
    %2466 = vmatpush1.bf16.msra.mxu0 0
    %2467 = vmatprep.subr.bf16.mxu0 0
    %2468 = vmatpush1.bf16.msra.mxu0 0
    %2469 = vmatprep.subr.bf16.mxu0 0
    %2470 = vmatpush1.bf16.msra.mxu0 0
    %2471 = vmatprep.subr.bf16.mxu0 0
    %2472 = vmatpush1.bf16.msra.mxu0 0
    %2473 = vmatprep.subr.bf16.mxu0 0
    %2474 = vmatpush1.bf16.msra.mxu0 %v2457
    %2475 = vmatprep.subr.bf16.mxu0 0
    %2476 = vmatpush2.bf16.msra.mxu0 0
    %2477 = vmatprep.subr.bf16.mxu0 0
    %2478 = vmatpush2.bf16.msra.mxu0 0
    %2479 = vmatprep.subr.bf16.mxu0 0
    %2480 = vmatpush2.bf16.msra.mxu0 0
    %2481 = vmatprep.subr.bf16.mxu0 0
    %2482 = vmatpush2.bf16.msra.mxu0 0
    %2483 = vmatprep.subr.bf16.mxu0 0
    %2484 = vmatpush2.bf16.msra.mxu0 0
    %2485 = vmatprep.subr.bf16.mxu0 0
    %2486 = vmatpush2.bf16.msra.mxu0 0
    %2487 = vmatprep.subr.bf16.mxu0 0
    %2488 = vmatpush2.bf16.msra.mxu0 0
    %2489 = vmatprep.subr.bf16.mxu0 0
    %2490 = vmatpush2.bf16.msra.mxu0 0
    %2491 = vmatprep.mubr.bf16.mxu0 0
    %2492 = vmatmul.mubr.bf16.gmra.mxu0 %v2361
    %v2493 = vpop.f32.mrf.mxu0
    %v2494 = vadd.f32 0.0, %v2493
    %v2495 = vpop.f32.mrf.mxu0
    %v2496 = vpop.f32.mrf.mxu0
    %v2497 = vadd.f32 0.0, %v2496
    %v2498 = vpop.f32.mrf.mxu0
    %2499 = vmatprep.mubr.bf16.mxu0 0
    %2500 = vmatmul.mubr.bf16.gmra.mxu0 %v2364
    %v2501 = vpop.f32.mrf.mxu0
    %v2502 = vadd.f32 0.0, %v2501
    %v2503 = vpop.f32.mrf.mxu0
    %v2504 = vpop.f32.mrf.mxu0
    %v2505 = vadd.f32 0.0, %v2504
    %v2506 = vpop.f32.mrf.mxu0
    %2507 = vmatprep.mubr.bf16.mxu0 0
    %2508 = vmatmul.mubr.bf16.gmra.mxu0 %v2367
    %v2509 = vpop.f32.mrf.mxu0
    %v2510 = vadd.f32 0.0, %v2509
    %v2511 = vpop.f32.mrf.mxu0
    %v2512 = vpop.f32.mrf.mxu0
    %v2513 = vadd.f32 0.0, %v2512
    %v2514 = vpop.f32.mrf.mxu0
    %2515 = vmatprep.mubr.bf16.mxu0 0
    %2516 = vmatmul.mubr.bf16.gmra.mxu0 %v2370
    %v2517 = vpop.f32.mrf.mxu0
    %v2518 = vadd.f32 0.0, %v2517
    %v2519 = vpop.f32.mrf.mxu0
    %v2520 = vpop.f32.mrf.mxu0
    %v2521 = vadd.f32 0.0, %v2520
    %v2522 = vpop.f32.mrf.mxu0
    %2523 = vmatprep.mubr.bf16.mxu0 0
    %2524 = vmatmul.mubr.bf16.gmra.mxu0 %v2373
    %v2525 = vpop.f32.mrf.mxu0
    %v2526 = vadd.f32 0.0, %v2525
    %v2527 = vpop.f32.mrf.mxu0
    %v2528 = vpop.f32.mrf.mxu0
    %v2529 = vadd.f32 0.0, %v2528
    %v2530 = vpop.f32.mrf.mxu0
    %2531 = vmatprep.mubr.bf16.mxu0 0
    %2532 = vmatmul.mubr.bf16.gmra.mxu0 %v2376
    %v2533 = vpop.f32.mrf.mxu0
    %v2534 = vadd.f32 0.0, %v2533
    %v2535 = vpop.f32.mrf.mxu0
    %v2536 = vpop.f32.mrf.mxu0
    %v2537 = vadd.f32 0.0, %v2536
    %v2538 = vpop.f32.mrf.mxu0
    %2539 = vmatprep.mubr.bf16.mxu0 0
    %2540 = vmatmul.mubr.bf16.gmra.mxu0 %v2379
    %v2541 = vpop.f32.mrf.mxu0
    %v2542 = vadd.f32 0.0, %v2541
    %v2543 = vpop.f32.mrf.mxu0
    %v2544 = vpop.f32.mrf.mxu0
    %v2545 = vadd.f32 0.0, %v2544
    %v2546 = vpop.f32.mrf.mxu0
    %2547 = vmatprep.mubr.bf16.mxu0 0
    %2548 = vmatmul.mubr.bf16.gmra.mxu0 %v2382
    %v2549 = vpop.f32.mrf.mxu0
    %v2550 = vadd.f32 0.0, %v2549
    %v2551 = vpop.f32.mrf.mxu0
    %v2552 = vpop.f32.mrf.mxu0
    %v2553 = vadd.f32 0.0, %v2552
    %v2554 = vpop.f32.mrf.mxu0
    %2555 = vmatprep.mubr.bf16.mxu0 0
    %2556 = vmatmul.mubr.bf16.gmra.mxu0 %v2385
    %v2557 = vpop.f32.mrf.mxu0
    %v2558 = vadd.f32 0.0, %v2557
    %v2559 = vpop.f32.mrf.mxu0
    %v2560 = vpop.f32.mrf.mxu0
    %v2561 = vadd.f32 0.0, %v2560
    %v2562 = vpop.f32.mrf.mxu0
    %2563 = vmatprep.mubr.bf16.mxu0 0
    %2564 = vmatmul.mubr.bf16.gmra.mxu0 %v2388
    %v2565 = vpop.f32.mrf.mxu0
    %v2566 = vadd.f32 0.0, %v2565
    %v2567 = vpop.f32.mrf.mxu0
    %v2568 = vpop.f32.mrf.mxu0
    %v2569 = vadd.f32 0.0, %v2568
    %v2570 = vpop.f32.mrf.mxu0
    %2571 = vmatprep.mubr.bf16.mxu0 0
    %2572 = vmatmul.mubr.bf16.gmra.mxu0 %v2391
    %v2573 = vpop.f32.mrf.mxu0
    %v2574 = vadd.f32 0.0, %v2573
    %v2575 = vpop.f32.mrf.mxu0
    %v2576 = vpop.f32.mrf.mxu0
    %v2577 = vadd.f32 0.0, %v2576
    %v2578 = vpop.f32.mrf.mxu0
    %2579 = vmatprep.mubr.bf16.mxu0 0
    %2580 = vmatmul.mubr.bf16.gmra.mxu0 %v2394
    %v2581 = vpop.f32.mrf.mxu0
    %v2582 = vadd.f32 0.0, %v2581
    %v2583 = vpop.f32.mrf.mxu0
    %v2584 = vpop.f32.mrf.mxu0
    %v2585 = vadd.f32 0.0, %v2584
    %v2586 = vpop.f32.mrf.mxu0
    %2587 = vmatprep.mubr.bf16.mxu0 0
    %2588 = vmatmul.mubr.bf16.gmra.mxu0 %v2397
    %v2589 = vpop.f32.mrf.mxu0
    %v2590 = vadd.f32 0.0, %v2589
    %v2591 = vpop.f32.mrf.mxu0
    %v2592 = vpop.f32.mrf.mxu0
    %v2593 = vadd.f32 0.0, %v2592
    %v2594 = vpop.f32.mrf.mxu0
    %2595 = vmatprep.mubr.bf16.mxu0 0
    %2596 = vmatmul.mubr.bf16.gmra.mxu0 %v2400
    %v2597 = vpop.f32.mrf.mxu0
    %v2598 = vadd.f32 0.0, %v2597
    %v2599 = vpop.f32.mrf.mxu0
    %v2600 = vpop.f32.mrf.mxu0
    %v2601 = vadd.f32 0.0, %v2600
    %v2602 = vpop.f32.mrf.mxu0
    %2603 = vmatprep.mubr.bf16.mxu0 0
    %2604 = vmatmul.mubr.bf16.gmra.mxu0 %v2403
    %v2605 = vpop.f32.mrf.mxu0
    %v2606 = vadd.f32 0.0, %v2605
    %v2607 = vpop.f32.mrf.mxu0
    %v2608 = vpop.f32.mrf.mxu0
    %v2609 = vadd.f32 0.0, %v2608
    %v2610 = vpop.f32.mrf.mxu0
    %2611 = vmatprep.mubr.bf16.mxu0 0
    %2612 = vmatmul.mubr.bf16.gmra.mxu0 %v2406
    %v2613 = vpop.f32.mrf.mxu0
    %v2614 = vadd.f32 0.0, %v2613
    %v2615 = vpop.f32.mrf.mxu0
    %v2616 = vpop.f32.mrf.mxu0
    %v2617 = vadd.f32 0.0, %v2616
    %v2618 = vpop.f32.mrf.mxu0
    %2619 = vmatprep.mubr.bf16.mxu0 0
    %2620 = vmatmul.mubr.bf16.gmra.mxu0 %v2409
    %v2621 = vpop.f32.mrf.mxu0
    %v2622 = vadd.f32 0.0, %v2621
    %v2623 = vpop.f32.mrf.mxu0
    %v2624 = vpop.f32.mrf.mxu0
    %v2625 = vadd.f32 0.0, %v2624
    %v2626 = vpop.f32.mrf.mxu0
    %2627 = vmatprep.mubr.bf16.mxu0 0
    %2628 = vmatmul.mubr.bf16.gmra.mxu0 %v2412
    %v2629 = vpop.f32.mrf.mxu0
    %v2630 = vadd.f32 0.0, %v2629
    %v2631 = vpop.f32.mrf.mxu0
    %v2632 = vpop.f32.mrf.mxu0
    %v2633 = vadd.f32 0.0, %v2632
    %v2634 = vpop.f32.mrf.mxu0
    %2635 = vmatprep.mubr.bf16.mxu0 0
    %2636 = vmatmul.mubr.bf16.gmra.mxu0 %v2415
    %v2637 = vpop.f32.mrf.mxu0
    %v2638 = vadd.f32 0.0, %v2637
    %v2639 = vpop.f32.mrf.mxu0
    %v2640 = vpop.f32.mrf.mxu0
    %v2641 = vadd.f32 0.0, %v2640
    %v2642 = vpop.f32.mrf.mxu0
    %2643 = vmatprep.mubr.bf16.mxu0 0
    %2644 = vmatmul.mubr.bf16.gmra.mxu0 %v2418
    %v2645 = vpop.f32.mrf.mxu0
    %v2646 = vadd.f32 0.0, %v2645
    %v2647 = vpop.f32.mrf.mxu0
    %v2648 = vpop.f32.mrf.mxu0
    %v2649 = vadd.f32 0.0, %v2648
    %v2650 = vpop.f32.mrf.mxu0
    %2651 = vmatprep.mubr.bf16.mxu0 0
    %2652 = vmatmul.mubr.bf16.gmra.mxu0 %v2421
    %v2653 = vpop.f32.mrf.mxu0
    %v2654 = vadd.f32 0.0, %v2653
    %v2655 = vpop.f32.mrf.mxu0
    %v2656 = vpop.f32.mrf.mxu0
    %v2657 = vadd.f32 0.0, %v2656
    %v2658 = vpop.f32.mrf.mxu0
    %2659 = vmatprep.mubr.bf16.mxu0 0
    %2660 = vmatmul.mubr.bf16.gmra.mxu0 %v2424
    %v2661 = vpop.f32.mrf.mxu0
    %v2662 = vadd.f32 0.0, %v2661
    %v2663 = vpop.f32.mrf.mxu0
    %v2664 = vpop.f32.mrf.mxu0
    %v2665 = vadd.f32 0.0, %v2664
    %v2666 = vpop.f32.mrf.mxu0
    %2667 = vmatprep.mubr.bf16.mxu0 0
    %2668 = vmatmul.mubr.bf16.gmra.mxu0 %v2427
    %v2669 = vpop.f32.mrf.mxu0
    %v2670 = vadd.f32 0.0, %v2669
    %v2671 = vpop.f32.mrf.mxu0
    %v2672 = vpop.f32.mrf.mxu0
    %v2673 = vadd.f32 0.0, %v2672
    %v2674 = vpop.f32.mrf.mxu0
    %2675 = vmatprep.mubr.bf16.mxu0 0
    %2676 = vmatmul.mubr.bf16.gmra.mxu0 %v2430
    %v2677 = vpop.f32.mrf.mxu0
    %v2678 = vadd.f32 0.0, %v2677
    %v2679 = vpop.f32.mrf.mxu0
    %v2680 = vpop.f32.mrf.mxu0
    %v2681 = vadd.f32 0.0, %v2680
    %v2682 = vpop.f32.mrf.mxu0
    %2683 = vmatprep.mubr.bf16.mxu0 0
    %2684 = vmatmul.mubr.bf16.gmra.mxu0 %v2433
    %v2685 = vpop.f32.mrf.mxu0
    %v2686 = vadd.f32 0.0, %v2685
    %v2687 = vpop.f32.mrf.mxu0
    %v2688 = vpop.f32.mrf.mxu0
    %v2689 = vadd.f32 0.0, %v2688
    %v2690 = vpop.f32.mrf.mxu0
    %2691 = vmatprep.mubr.bf16.mxu0 0
    %2692 = vmatmul.mubr.bf16.gmra.mxu0 %v2436
    %v2693 = vpop.f32.mrf.mxu0
    %v2694 = vadd.f32 0.0, %v2693
    %v2695 = vpop.f32.mrf.mxu0
    %v2696 = vpop.f32.mrf.mxu0
    %v2697 = vadd.f32 0.0, %v2696
    %v2698 = vpop.f32.mrf.mxu0
    %2699 = vmatprep.mubr.bf16.mxu0 0
    %2700 = vmatmul.mubr.bf16.gmra.mxu0 %v2439
    %v2701 = vpop.f32.mrf.mxu0
    %v2702 = vadd.f32 0.0, %v2701
    %v2703 = vpop.f32.mrf.mxu0
    %v2704 = vpop.f32.mrf.mxu0
    %v2705 = vadd.f32 0.0, %v2704
    %v2706 = vpop.f32.mrf.mxu0
    %2707 = vmatprep.mubr.bf16.mxu0 0
    %2708 = vmatmul.mubr.bf16.gmra.mxu0 %v2442
    %v2709 = vpop.f32.mrf.mxu0
    %v2710 = vadd.f32 0.0, %v2709
    %v2711 = vpop.f32.mrf.mxu0
    %v2712 = vpop.f32.mrf.mxu0
    %v2713 = vadd.f32 0.0, %v2712
    %v2714 = vpop.f32.mrf.mxu0
    %2715 = vmatprep.mubr.bf16.mxu0 0
    %2716 = vmatmul.mubr.bf16.gmra.mxu0 %v2445
    %v2717 = vpop.f32.mrf.mxu0
    %v2718 = vadd.f32 0.0, %v2717
    %v2719 = vpop.f32.mrf.mxu0
    %v2720 = vpop.f32.mrf.mxu0
    %v2721 = vadd.f32 0.0, %v2720
    %v2722 = vpop.f32.mrf.mxu0
    %2723 = vmatprep.mubr.bf16.mxu0 0
    %2724 = vmatmul.mubr.bf16.gmra.mxu0 %v2448
    %v2725 = vpop.f32.mrf.mxu0
    %v2726 = vadd.f32 0.0, %v2725
    %v2727 = vpop.f32.mrf.mxu0
    %v2728 = vpop.f32.mrf.mxu0
    %v2729 = vadd.f32 0.0, %v2728
    %v2730 = vpop.f32.mrf.mxu0
    %2731 = vmatprep.mubr.bf16.mxu0 0
    %2732 = vmatmul.mubr.bf16.gmra.mxu0 %v2451
    %v2733 = vpop.f32.mrf.mxu0
    %v2734 = vadd.f32 0.0, %v2733
    %v2735 = vpop.f32.mrf.mxu0
    %v2736 = vpop.f32.mrf.mxu0
    %v2737 = vadd.f32 0.0, %v2736
    %v2738 = vpop.f32.mrf.mxu0
    %2739 = vmatprep.mubr.bf16.mxu0 0
    %2740 = vmatmul.mubr.bf16.gmra.mxu0 %v2454
    %v2741 = vpop.f32.mrf.mxu0
    %v2742 = vadd.f32 0.0, %v2741
    %v2743 = vpop.f32.mrf.mxu0
    %v2744 = vpop.f32.mrf.mxu0
    %v2745 = vadd.f32 0.0, %v2744
    %v2746 = vpop.f32.mrf.mxu0
    %2747 = vdwg.mxu0
    %v2748 = vadd.f32 %v1679, %v2494
    %v2749 = vadd.f32 %v1682, %v2497
    %v2750 = vadd.f32 %v1687, %v2502
    %v2751 = vadd.f32 %v1690, %v2505
    %v2752 = vadd.f32 %v1695, %v2510
    %v2753 = vadd.f32 %v1698, %v2513
    %v2754 = vadd.f32 %v1703, %v2518
    %v2755 = vadd.f32 %v1706, %v2521
    %v2756 = vadd.f32 %v1711, %v2526
    %v2757 = vadd.f32 %v1714, %v2529
    %v2758 = vadd.f32 %v1719, %v2534
    %v2759 = vadd.f32 %v1722, %v2537
    %v2760 = vadd.f32 %v1727, %v2542
    %v2761 = vadd.f32 %v1730, %v2545
    %v2762 = vadd.f32 %v1735, %v2550
    %v2763 = vadd.f32 %v1738, %v2553
    %v2764 = vadd.f32 %v1743, %v2558
    %v2765 = vadd.f32 %v1746, %v2561
    %v2766 = vadd.f32 %v1751, %v2566
    %v2767 = vadd.f32 %v1754, %v2569
    %v2768 = vadd.f32 %v1759, %v2574
    %v2769 = vadd.f32 %v1762, %v2577
    %v2770 = vadd.f32 %v1767, %v2582
    %v2771 = vadd.f32 %v1770, %v2585
    %v2772 = vadd.f32 %v1775, %v2590
    %v2773 = vadd.f32 %v1778, %v2593
    %v2774 = vadd.f32 %v1783, %v2598
    %v2775 = vadd.f32 %v1786, %v2601
    %v2776 = vadd.f32 %v1791, %v2606
    %v2777 = vadd.f32 %v1794, %v2609
    %v2778 = vadd.f32 %v1799, %v2614
    %v2779 = vadd.f32 %v1802, %v2617
    %v2780 = vadd.f32 %v1807, %v2622
    %v2781 = vadd.f32 %v1810, %v2625
    %v2782 = vadd.f32 %v1815, %v2630
    %v2783 = vadd.f32 %v1818, %v2633
    %v2784 = vadd.f32 %v1823, %v2638
    %v2785 = vadd.f32 %v1826, %v2641
    %v2786 = vadd.f32 %v1831, %v2646
    %v2787 = vadd.f32 %v1834, %v2649
    %v2788 = vadd.f32 %v1839, %v2654
    %v2789 = vadd.f32 %v1842, %v2657
    %v2790 = vadd.f32 %v1847, %v2662
    %v2791 = vadd.f32 %v1850, %v2665
    %v2792 = vadd.f32 %v1855, %v2670
    %v2793 = vadd.f32 %v1858, %v2673
    %v2794 = vadd.f32 %v1863, %v2678
    %v2795 = vadd.f32 %v1866, %v2681
    %v2796 = vadd.f32 %v1871, %v2686
    %v2797 = vadd.f32 %v1874, %v2689
    %v2798 = vadd.f32 %v1879, %v2694
    %v2799 = vadd.f32 %v1882, %v2697
    %v2800 = vadd.f32 %v1887, %v2702
    %v2801 = vadd.f32 %v1890, %v2705
    %v2802 = vadd.f32 %v1895, %v2710
    %v2803 = vadd.f32 %v1898, %v2713
    %v2804 = vadd.f32 %v1903, %v2718
    %v2805 = vadd.f32 %v1906, %v2721
    %v2806 = vadd.f32 %v1911, %v2726
    %v2807 = vadd.f32 %v1914, %v2729
    %v2808 = vadd.f32 %v1919, %v2734
    %v2809 = vadd.f32 %v1922, %v2737
    %v2810 = vadd.f32 %v1927, %v2742
    %v2811 = vadd.f32 %v1930, %v2745
    %2812 = vst [vmem:[#allocation2] sm:$0xff] %v2748
    %2813 = vst [vmem:[#allocation2 + $0x8] sm:$0xff] %v2749
    %2814 = vst [vmem:[#allocation2 + $0x10] sm:$0xff] %v2750
    %2815 = vst [vmem:[#allocation2 + $0x18] sm:$0xff] %v2751
    %2816 = vst [vmem:[#allocation2 + $0x20] sm:$0xff] %v2752
    %2817 = vst [vmem:[#allocation2 + $0x28] sm:$0xff] %v2753
    %2818 = vst [vmem:[#allocation2 + $0x30] sm:$0xff] %v2754
    %2819 = vst [vmem:[#allocation2 + $0x38] sm:$0xff] %v2755
    %2820 = vst [vmem:[#allocation2 + $0x40] sm:$0xff] %v2756
    %2821 = vst [vmem:[#allocation2 + $0x48] sm:$0xff] %v2757
    %2822 = vst [vmem:[#allocation2 + $0x50] sm:$0xff] %v2758
    %2823 = vst [vmem:[#allocation2 + $0x58] sm:$0xff] %v2759
    %2824 = vst [vmem:[#allocation2 + $0x60] sm:$0xff] %v2760
    %2825 = vst [vmem:[#allocation2 + $0x68] sm:$0xff] %v2761
    %2826 = vst [vmem:[#allocation2 + $0x70] sm:$0xff] %v2762
    %2827 = vst [vmem:[#allocation2 + $0x78] sm:$0xff] %v2763
    %2828 = vst [vmem:[#allocation2 + $0x80] sm:$0xff] %v2764
    %2829 = vst [vmem:[#allocation2 + $0x88] sm:$0xff] %v2765
    %2830 = vst [vmem:[#allocation2 + $0x90] sm:$0xff] %v2766
    %2831 = vst [vmem:[#allocation2 + $0x98] sm:$0xff] %v2767
    %2832 = vst [vmem:[#allocation2 + $0xa0] sm:$0xff] %v2768
    %2833 = vst [vmem:[#allocation2 + $0xa8] sm:$0xff] %v2769
    %2834 = vst [vmem:[#allocation2 + $0xb0] sm:$0xff] %v2770
    %2835 = vst [vmem:[#allocation2 + $0xb8] sm:$0xff] %v2771
    %2836 = vst [vmem:[#allocation2 + $0xc0] sm:$0xff] %v2772
    %2837 = vst [vmem:[#allocation2 + $0xc8] sm:$0xff] %v2773
    %2838 = vst [vmem:[#allocation2 + $0xd0] sm:$0xff] %v2774
    %2839 = vst [vmem:[#allocation2 + $0xd8] sm:$0xff] %v2775
    %2840 = vst [vmem:[#allocation2 + $0xe0] sm:$0xff] %v2776
    %2841 = vst [vmem:[#allocation2 + $0xe8] sm:$0xff] %v2777
    %2842 = vst [vmem:[#allocation2 + $0xf0] sm:$0xff] %v2778
    %2843 = vst [vmem:[#allocation2 + $0xf8] sm:$0xff] %v2779
    %2844 = vst [vmem:[#allocation2 + $0x100] sm:$0xff] %v2780
    %2845 = vst [vmem:[#allocation2 + $0x108] sm:$0xff] %v2781
    %2846 = vst [vmem:[#allocation2 + $0x110] sm:$0xff] %v2782
    %2847 = vst [vmem:[#allocation2 + $0x118] sm:$0xff] %v2783
    %2848 = vst [vmem:[#allocation2 + $0x120] sm:$0xff] %v2784
    %2849 = vst [vmem:[#allocation2 + $0x128] sm:$0xff] %v2785
    %2850 = vst [vmem:[#allocation2 + $0x130] sm:$0xff] %v2786
    %2851 = vst [vmem:[#allocation2 + $0x138] sm:$0xff] %v2787
    %2852 = vst [vmem:[#allocation2 + $0x140] sm:$0xff] %v2788
    %2853 = vst [vmem:[#allocation2 + $0x148] sm:$0xff] %v2789
    %2854 = vst [vmem:[#allocation2 + $0x150] sm:$0xff] %v2790
    %2855 = vst [vmem:[#allocation2 + $0x158] sm:$0xff] %v2791
    %2856 = vst [vmem:[#allocation2 + $0x160] sm:$0xff] %v2792
    %2857 = vst [vmem:[#allocation2 + $0x168] sm:$0xff] %v2793
    %2858 = vst [vmem:[#allocation2 + $0x170] sm:$0xff] %v2794
    %2859 = vst [vmem:[#allocation2 + $0x178] sm:$0xff] %v2795
    %2860 = vst [vmem:[#allocation2 + $0x180] sm:$0xff] %v2796
    %2861 = vst [vmem:[#allocation2 + $0x188] sm:$0xff] %v2797
    %2862 = vst [vmem:[#allocation2 + $0x190] sm:$0xff] %v2798
    %2863 = vst [vmem:[#allocation2 + $0x198] sm:$0xff] %v2799
    %2864 = vst [vmem:[#allocation2 + $0x1a0] sm:$0xff] %v2800
    %2865 = vst [vmem:[#allocation2 + $0x1a8] sm:$0xff] %v2801
    %2866 = vst [vmem:[#allocation2 + $0x1b0] sm:$0xff] %v2802
    %2867 = vst [vmem:[#allocation2 + $0x1b8] sm:$0xff] %v2803
    %2868 = vst [vmem:[#allocation2 + $0x1c0] sm:$0xff] %v2804
    %2869 = vst [vmem:[#allocation2 + $0x1c8] sm:$0xff] %v2805
    %2870 = vst [vmem:[#allocation2 + $0x1d0] sm:$0xff] %v2806
    %2871 = vst [vmem:[#allocation2 + $0x1d8] sm:$0xff] %v2807
    %2872 = vst [vmem:[#allocation2 + $0x1e0] sm:$0xff] %v2808
    %2873 = vst [vmem:[#allocation2 + $0x1e8] sm:$0xff] %v2809
    %2874 = vst [vmem:[#allocation2 + $0x1f0] sm:$0xff] %v2810
    %2875 = vst [vmem:[#allocation2 + $0x1f8] sm:$0xff] %v2811
    %v2876 = vadd.f32 %v2748, %v2749
    %v2877 = vadd.f32 %v2876, %v2750
    %v2878 = vadd.f32 %v2877, %v2751
    %v2879 = vadd.f32 %v2878, %v2752
    %v2880 = vadd.f32 %v2879, %v2753
    %v2881 = vadd.f32 %v2880, %v2754
    %v2882 = vadd.f32 %v2881, %v2755
    %v2883 = vadd.f32 %v2882, %v2756
    %v2884 = vadd.f32 %v2883, %v2757
    %v2885 = vadd.f32 %v2884, %v2758
    %v2886 = vadd.f32 %v2885, %v2759
    %v2887 = vadd.f32 %v2886, %v2760
    %v2888 = vadd.f32 %v2887, %v2761
    %v2889 = vadd.f32 %v2888, %v2762
    %v2890 = vadd.f32 %v2889, %v2763
    %v2891 = vadd.f32 %v2890, %v2764
    %v2892 = vadd.f32 %v2891, %v2765
    %v2893 = vadd.f32 %v2892, %v2766
    %v2894 = vadd.f32 %v2893, %v2767
    %v2895 = vadd.f32 %v2894, %v2768
    %v2896 = vadd.f32 %v2895, %v2769
    %v2897 = vadd.f32 %v2896, %v2770
    %v2898 = vadd.f32 %v2897, %v2771
    %v2899 = vadd.f32 %v2898, %v2772
    %v2900 = vadd.f32 %v2899, %v2773
    %v2901 = vadd.f32 %v2900, %v2774
    %v2902 = vadd.f32 %v2901, %v2775
    %v2903 = vadd.f32 %v2902, %v2776
    %v2904 = vadd.f32 %v2903, %v2777
    %v2905 = vadd.f32 %v2904, %v2778
    %v2906 = vadd.f32 %v2905, %v2779
    %v2907 = vadd.f32 %v2906, %v2780
    %v2908 = vadd.f32 %v2907, %v2781
    %v2909 = vadd.f32 %v2908, %v2782
    %v2910 = vadd.f32 %v2909, %v2783
    %v2911 = vadd.f32 %v2910, %v2784
    %v2912 = vadd.f32 %v2911, %v2785
    %v2913 = vadd.f32 %v2912, %v2786
    %v2914 = vadd.f32 %v2913, %v2787
    %v2915 = vadd.f32 %v2914, %v2788
    %v2916 = vadd.f32 %v2915, %v2789
    %v2917 = vadd.f32 %v2916, %v2790
    %v2918 = vadd.f32 %v2917, %v2791
    %v2919 = vadd.f32 %v2918, %v2792
    %v2920 = vadd.f32 %v2919, %v2793
    %v2921 = vadd.f32 %v2920, %v2794
    %v2922 = vadd.f32 %v2921, %v2795
    %v2923 = vadd.f32 %v2922, %v2796
    %v2924 = vadd.f32 %v2923, %v2797
    %v2925 = vadd.f32 %v2924, %v2798
    %v2926 = vadd.f32 %v2925, %v2799
    %v2927 = vadd.f32 %v2926, %v2800
    %v2928 = vadd.f32 %v2927, %v2801
    %v2929 = vadd.f32 %v2928, %v2802
    %v2930 = vadd.f32 %v2929, %v2803
    %v2931 = vadd.f32 %v2930, %v2804
    %v2932 = vadd.f32 %v2931, %v2805
    %v2933 = vadd.f32 %v2932, %v2806
    %v2934 = vadd.f32 %v2933, %v2807
    %v2935 = vadd.f32 %v2934, %v2808
    %v2936 = vadd.f32 %v2935, %v2809
    %v2937 = vadd.f32 %v2936, %v2810
    %v2938 = vadd.f32 %v2937, %v2811
    %v2939 = vrot.slane %v2938, 4
    %v2940 = vadd.f32 %v2938, %v2939
    %v2941 = vrot.slane %v2940, 2
    %v2942 = vadd.f32 %v2940, %v2941
    %v2943 = vrot.slane %v2942, 1
    %v2944 = vadd.f32 %v2942, %v2943
    %v2945 = vmul.f32 %v2748, %v2748
    %v2946 = vmul.f32 %v2749, %v2749
    %v2947 = vmul.f32 %v2750, %v2750
    %v2948 = vmul.f32 %v2751, %v2751
    %v2949 = vmul.f32 %v2752, %v2752
    %v2950 = vmul.f32 %v2753, %v2753
    %v2951 = vmul.f32 %v2754, %v2754
    %v2952 = vmul.f32 %v2755, %v2755
    %v2953 = vmul.f32 %v2756, %v2756
    %v2954 = vmul.f32 %v2757, %v2757
    %v2955 = vmul.f32 %v2758, %v2758
    %v2956 = vmul.f32 %v2759, %v2759
    %v2957 = vmul.f32 %v2760, %v2760
    %v2958 = vmul.f32 %v2761, %v2761
    %v2959 = vmul.f32 %v2762, %v2762
    %v2960 = vmul.f32 %v2763, %v2763
    %v2961 = vmul.f32 %v2764, %v2764
    %v2962 = vmul.f32 %v2765, %v2765
    %v2963 = vmul.f32 %v2766, %v2766
    %v2964 = vmul.f32 %v2767, %v2767
    %v2965 = vmul.f32 %v2768, %v2768
    %v2966 = vmul.f32 %v2769, %v2769
    %v2967 = vmul.f32 %v2770, %v2770
    %v2968 = vmul.f32 %v2771, %v2771
    %v2969 = vmul.f32 %v2772, %v2772
    %v2970 = vmul.f32 %v2773, %v2773
    %v2971 = vmul.f32 %v2774, %v2774
    %v2972 = vmul.f32 %v2775, %v2775
    %v2973 = vmul.f32 %v2776, %v2776
    %v2974 = vmul.f32 %v2777, %v2777
    %v2975 = vmul.f32 %v2778, %v2778
    %v2976 = vmul.f32 %v2779, %v2779
    %v2977 = vmul.f32 %v2780, %v2780
    %v2978 = vmul.f32 %v2781, %v2781
    %v2979 = vmul.f32 %v2782, %v2782
    %v2980 = vmul.f32 %v2783, %v2783
    %v2981 = vmul.f32 %v2784, %v2784
    %v2982 = vmul.f32 %v2785, %v2785
    %v2983 = vmul.f32 %v2786, %v2786
    %v2984 = vmul.f32 %v2787, %v2787
    %v2985 = vmul.f32 %v2788, %v2788
    %v2986 = vmul.f32 %v2789, %v2789
    %v2987 = vmul.f32 %v2790, %v2790
    %v2988 = vmul.f32 %v2791, %v2791
    %v2989 = vmul.f32 %v2792, %v2792
    %v2990 = vmul.f32 %v2793, %v2793
    %v2991 = vmul.f32 %v2794, %v2794
    %v2992 = vmul.f32 %v2795, %v2795
    %v2993 = vmul.f32 %v2796, %v2796
    %v2994 = vmul.f32 %v2797, %v2797
    %v2995 = vmul.f32 %v2798, %v2798
    %v2996 = vmul.f32 %v2799, %v2799
    %v2997 = vmul.f32 %v2800, %v2800
    %v2998 = vmul.f32 %v2801, %v2801
    %v2999 = vmul.f32 %v2802, %v2802
    %v3000 = vmul.f32 %v2803, %v2803
    %v3001 = vmul.f32 %v2804, %v2804
    %v3002 = vmul.f32 %v2805, %v2805
    %v3003 = vmul.f32 %v2806, %v2806
    %v3004 = vmul.f32 %v2807, %v2807
    %v3005 = vmul.f32 %v2808, %v2808
    %v3006 = vmul.f32 %v2809, %v2809
    %v3007 = vmul.f32 %v2810, %v2810
    %v3008 = vmul.f32 %v2811, %v2811
    %v3009 = vadd.f32 %v2945, %v2946
    %v3010 = vadd.f32 %v3009, %v2947
    %v3011 = vadd.f32 %v3010, %v2948
    %v3012 = vadd.f32 %v3011, %v2949
    %v3013 = vadd.f32 %v3012, %v2950
    %v3014 = vadd.f32 %v3013, %v2951
    %v3015 = vadd.f32 %v3014, %v2952
    %v3016 = vadd.f32 %v3015, %v2953
    %v3017 = vadd.f32 %v3016, %v2954
    %v3018 = vadd.f32 %v3017, %v2955
    %v3019 = vadd.f32 %v3018, %v2956
    %v3020 = vadd.f32 %v3019, %v2957
    %v3021 = vadd.f32 %v3020, %v2958
    %v3022 = vadd.f32 %v3021, %v2959
    %v3023 = vadd.f32 %v3022, %v2960
    %v3024 = vadd.f32 %v3023, %v2961
    %v3025 = vadd.f32 %v3024, %v2962
    %v3026 = vadd.f32 %v3025, %v2963
    %v3027 = vadd.f32 %v3026, %v2964
    %v3028 = vadd.f32 %v3027, %v2965
    %v3029 = vadd.f32 %v3028, %v2966
    %v3030 = vadd.f32 %v3029, %v2967
    %v3031 = vadd.f32 %v3030, %v2968
    %v3032 = vadd.f32 %v3031, %v2969
    %v3033 = vadd.f32 %v3032, %v2970
    %v3034 = vadd.f32 %v3033, %v2971
    %v3035 = vadd.f32 %v3034, %v2972
    %v3036 = vadd.f32 %v3035, %v2973
    %v3037 = vadd.f32 %v3036, %v2974
    %v3038 = vadd.f32 %v3037, %v2975
    %v3039 = vadd.f32 %v3038, %v2976
    %v3040 = vadd.f32 %v3039, %v2977
    %v3041 = vadd.f32 %v3040, %v2978
    %v3042 = vadd.f32 %v3041, %v2979
    %v3043 = vadd.f32 %v3042, %v2980
    %v3044 = vadd.f32 %v3043, %v2981
    %v3045 = vadd.f32 %v3044, %v2982
    %v3046 = vadd.f32 %v3045, %v2983
    %v3047 = vadd.f32 %v3046, %v2984
    %v3048 = vadd.f32 %v3047, %v2985
    %v3049 = vadd.f32 %v3048, %v2986
    %v3050 = vadd.f32 %v3049, %v2987
    %v3051 = vadd.f32 %v3050, %v2988
    %v3052 = vadd.f32 %v3051, %v2989
    %v3053 = vadd.f32 %v3052, %v2990
    %v3054 = vadd.f32 %v3053, %v2991
    %v3055 = vadd.f32 %v3054, %v2992
    %v3056 = vadd.f32 %v3055, %v2993
    %v3057 = vadd.f32 %v3056, %v2994
    %v3058 = vadd.f32 %v3057, %v2995
    %v3059 = vadd.f32 %v3058, %v2996
    %v3060 = vadd.f32 %v3059, %v2997
    %v3061 = vadd.f32 %v3060, %v2998
    %v3062 = vadd.f32 %v3061, %v2999
    %v3063 = vadd.f32 %v3062, %v3000
    %v3064 = vadd.f32 %v3063, %v3001
    %v3065 = vadd.f32 %v3064, %v3002
    %v3066 = vadd.f32 %v3065, %v3003
    %v3067 = vadd.f32 %v3066, %v3004
    %v3068 = vadd.f32 %v3067, %v3005
    %v3069 = vadd.f32 %v3068, %v3006
    %v3070 = vadd.f32 %v3069, %v3007
    %v3071 = vadd.f32 %v3070, %v3008
    %v3072 = vrot.slane %v3071, 4
    %v3073 = vadd.f32 %v3071, %v3072
    %v3074 = vrot.slane %v3073, 2
    %v3075 = vadd.f32 %v3073, %v3074
    %v3076 = vrot.slane %v3075, 1
    %v3077 = vadd.f32 %v3075, %v3076
    %3078 = vst [vmem:[#allocation4] sm:$0x1] %v2944
    %3079 = vst [vmem:[#allocation6] sm:$0x1] %v3077
    // Predicated region
    $region10: #{tpu_custom_call.1} parent=1 // pred_check
      _
    $region11: #{tpu_custom_call.1} parent=1 // pred_check_branch
      %3081 = sbr.rel (0) target = $region13
    $region12: #{tpu_custom_call.1} parent=1 // pred_region
      %s3083 = ssub.s32 8192, 8192
      %3084 = vsyncadd [#allocation3], %s3083
      %s3085 = sshll.u32 [#allocation2], 4
      %s3086 = int_to_ptr.vmem [resolvable:$true] %s3085
      %3091 = dma.vmem_to_hbm [thread:$0]  %s3086, 8192, %s2, [#allocation3], 128, 128, 8
    $region13: #{tpu_custom_call.1} parent=1 // pred_fallthru
      _
    // Predicated region
    $region14: #{tpu_custom_call.1} parent=1 // pred_check
      _
    $region15: #{tpu_custom_call.1} parent=1 // pred_check_branch
      %3093 = sbr.rel (0) target = $region17
    $region16: #{tpu_custom_call.1} parent=1 // pred_region
      %s3095 = ssub.s32 16, 16
      %3096 = vsyncadd [#allocation5], %s3095
      %s3098 = sshll.u32 [#allocation4], 4
      %s3099 = int_to_ptr.vmem [resolvable:$true] %s3098
      %3101 = dma.vmem_to_hbm [thread:$0]  %s3099, 16, %s3, [#allocation5]
    $region17: #{tpu_custom_call.1} parent=1 // pred_fallthru
      _
    // Predicated region
    $region18: #{tpu_custom_call.1} parent=1 // pred_check
      _
    $region19: #{tpu_custom_call.1} parent=1 // pred_check_branch
      %3103 = sbr.rel (0) target = $region21
    $region20: #{tpu_custom_call.1} parent=1 // pred_region
      %s3105 = ssub.s32 16, 16
      %3106 = vsyncadd [#allocation5], %s3105
      %s3108 = sshll.u32 [#allocation6], 4
      %s3109 = int_to_ptr.vmem [resolvable:$true] %s3108
      %3111 = dma.vmem_to_hbm [thread:$0]  %s3109, 16, %s4, [#allocation5]
    $region21: #{tpu_custom_call.1} parent=1 // pred_fallthru
      _
    // Predicated region
    $region22: #{tpu_custom_call.1} parent=1 // pred_check
      _
    $region23: #{tpu_custom_call.1} parent=1 // pred_check_branch
      %3113 = sbr.rel (0) target = $region25
    $region24: #{tpu_custom_call.1} parent=1 // pred_region
      %3114 = dma.done [#allocation3], 8192
    $region25: #{tpu_custom_call.1} parent=1 // pred_fallthru
      _
    // Predicated region
    $region26: #{tpu_custom_call.1} parent=1 // pred_check
      _
    $region27: #{tpu_custom_call.1} parent=1 // pred_check_branch
      %3116 = sbr.rel (0) target = $region29
    $region28: #{tpu_custom_call.1} parent=1 // pred_region
      %3117 = dma.done [#allocation5], 16
    $region29: #{tpu_custom_call.1} parent=1 // pred_fallthru
      _
    // Predicated region
    $region30: #{tpu_custom_call.1} parent=1 // pred_check
      _
    $region31: #{tpu_custom_call.1} parent=1 // pred_check_branch
      %3119 = sbr.rel (0) target = $region33
    $region32: #{tpu_custom_call.1} parent=1 // pred_region
      %3120 = dma.done [#allocation5], 16
    $region33: #{tpu_custom_call.1} parent=1 // pred_fallthru
      _
    %3121 = vsyncpa [#allocation3], 1
    %3122 = vsyncpa [#allocation5], 1

</llo_original>
